<compile_context>
chip_gen: v7x
topology: tpu7x:2x2x1
jax: 0.10.0
libtpu: 0.0.40
codegen_flags: <defaults>
</compile_context>

<pallas_src>
import functools

import jax
import jax.numpy as jnp
from jax.experimental import pallas as pl
from jax.experimental.pallas import tpu as pltpu

# ---- static module hyper-parameters (from the PyTorch __init__) ------------
KERNEL_NUM = 250          # fixed in the module
K_PAD = 256               # KERNEL_NUM zero-padded to a lane-aligned width
EMBED_DIM = 32            # embedding_dim (chosen small)
VOCAB = 50                # len(vocab) (chosen small)
N_CLASSES = 4             # class_number (chosen small)
SEQ_LEN = 16              # input sequence length
BATCH = 2


# ------------------------- in-kernel helper functions ------------------------
def _conv3_same(x2d, w, b, n_batch, residual=None):
    """relu -> per-batch zero-pad H by 1 -> 3-tap conv as ONE im2col matmul.

    x2d:  (B*H, C)   f32 value (batch folded into rows)
    w:    (3*C, Cout) bf16 value (window-stacked weights)
    b:    (1, Cout)  f32 value
    """
    rows, c = x2d.shape
    h = rows // n_batch
    xr = jnp.maximum(x2d, 0.0)                      # relu(pad(x)) == pad(relu(x))
    z = jnp.zeros((1, c), xr.dtype)
    segs = []
    for bi in range(n_batch):                       # per-batch zero padding rows
        segs += [z, xr[bi * h:(bi + 1) * h], z]
    xp = jnp.concatenate(segs, axis=0)              # (B*(H+2), C)
    t = n_batch * (h + 2)
    # im2col: 3 shifted copies concatenated on the contraction (lane) axis
    cols = jnp.concatenate([xp[0:t - 2], xp[1:t - 1], xp[2:t]], axis=-1)
    y = jnp.dot(cols.astype(jnp.bfloat16), w,
                preferred_element_type=jnp.float32) + b        # (t-2, Cout)
    # keep only the valid rows of each batch segment -> back to (B*H, Cout)
    y = jnp.concatenate(
        [y[bi * (h + 2): bi * (h + 2) + h] for bi in range(n_batch)], axis=0)
    if residual is not None:
        y = y + residual
    return y


def _maxpool3s2(x2d, n_batch):
    """MaxPool2d(kernel=(3,1), stride=2) over H, batch folded into rows."""
    rows, _ = x2d.shape
    h = rows // n_batch
    ho = (h - 3) // 2 + 1
    out_rows = []
    for bi in range(n_batch):
        base = bi * h
        for j in range(ho):
            r0 = x2d[base + 2 * j:     base + 2 * j + 1]
            r1 = x2d[base + 2 * j + 1: base + 2 * j + 2]
            r2 = x2d[base + 2 * j + 2: base + 2 * j + 3]
            out_rows.append(jnp.maximum(jnp.maximum(r0, r1), r2))
    return jnp.concatenate(out_rows, axis=0)        # (B*Ho, C)


# ------------------------------ fused Pallas kernel ---------------------------
def _dpcnn_kernel(xcols_ref, wr_ref, br_ref, wc_ref, bc_ref, wfc_ref, bfc_ref,
                  out_ref, *, n_batch):
    # Hoist weight loads once; they stay resident in VMEM for the whole forward.
    wr = wr_ref[...]            # (3*E, K_PAD)   bf16
    br = br_ref[...]            # (1, K_PAD)     f32
    wc = wc_ref[...]            # (3*K_PAD, K_PAD) bf16
    bc = bc_ref[...]            # (1, K_PAD)     f32

    # Region conv (valid, window of 3 over H): single matmul, batch in M.
    m = jnp.dot(xcols_ref[...].astype(jnp.bfloat16), wr,
                preferred_element_type=jnp.float32) + br       # (B*H0, K_PAD)

    conv = functools.partial(_conv3_same, w=wc, b=bc, n_batch=n_batch)

    y = conv(m)
    y = conv(y, residual=m)
    while y.shape[0] // n_batch > 2:                # _block, unrolled at trace time
        px = _maxpool3s2(y, n_batch)
        y = conv(conv(px), residual=px)
    if y.shape[0] // n_batch == 2:                  # MaxPool2d(kernel=(2,1))
        y = jnp.concatenate(
            [jnp.maximum(y[2 * bi:2 * bi + 1], y[2 * bi + 1:2 * bi + 2])
             for bi in range(n_batch)], axis=0)     # (B, K_PAD)

    # Final FC (padded K rows of w_fc are zero, so padding is inert).
    out_ref[...] = (jnp.dot(y, wfc_ref[...],
                            preferred_element_type=jnp.float32) + bfc_ref[...])


# ------------------------------ wrappers -------------------------------------
def prepare_params(p):
    """Zero-pad K 250->256, window-stack weights into matmul form, cast to bf16."""
    k = KERNEL_NUM
    wr = jnp.zeros((3, EMBED_DIM, K_PAD), jnp.float32).at[:, :, :k].set(p["w_region"])
    wr = wr.reshape(3 * EMBED_DIM, K_PAD).astype(jnp.bfloat16)
    br = jnp.zeros((1, K_PAD), jnp.float32).at[:, :k].set(p["b_region"])
    wc = jnp.zeros((3, K_PAD, K_PAD), jnp.float32).at[:, :k, :k].set(p["w_conv"])
    wc = wc.reshape(3 * K_PAD, K_PAD).astype(jnp.bfloat16)
    bc = jnp.zeros((1, K_PAD), jnp.float32).at[:, :k].set(p["b_conv"])
    wfc = jnp.zeros((K_PAD, N_CLASSES), jnp.float32).at[:k, :].set(p["w_fc"])
    return dict(wr=wr, br=br, wc=wc, bc=bc, wfc=wfc, bfc=p["b_fc"])


def dpcnn_forward(token_ids, embed, kp):
    """token_ids: (B, L) int32; embed: (V, E) f32; kp: prepared kernel params."""
    B, L = token_ids.shape
    H0 = L - 2
    # Embedding lookup (gather) + region-conv im2col -> plain JAX glue.
    x = jnp.take(embed, token_ids, axis=0)                           # (B, L, E)
    x_cols = jnp.concatenate([x[:, 0:H0], x[:, 1:H0 + 1], x[:, 2:H0 + 2]],
                             axis=-1)                                # (B, H0, 3E)
    x_cols = x_cols.reshape(B * H0, 3 * EMBED_DIM)                   # batch -> M

    vmem = pl.BlockSpec(memory_space=pltpu.MemorySpace.VMEM)
    return pl.pallas_call(
        functools.partial(_dpcnn_kernel, n_batch=B),
        out_shape=jax.ShapeDtypeStruct((B, N_CLASSES), jnp.float32),
        in_specs=[vmem] * 7,
        out_specs=vmem,
        compiler_params=pltpu.CompilerParams(vmem_limit_bytes=8 * 1024 * 1024),
    )(x_cols, kp["wr"], kp["br"], kp["wc"], kp["bc"], kp["wfc"], kp["bfc"])


# ------------------------------ pure-JAX reference ---------------------------
def _ref_conv3(xp, w, b, relu_in=False):
    if relu_in:
        xp = jnp.maximum(xp, 0.0)
    ho = xp.shape[1] - 2
    out = b
    for k in range(3):
        out = out + jnp.einsum("bhc,cd->bhd", xp[:, k:k + ho], w[k])
    return out


def _ref_maxpool3s2(x):
    ho = (x.shape[1] - 3) // 2 + 1
    return jnp.stack([x[:, 2 * h:2 * h + 3].max(axis=1) for h in range(ho)], axis=1)


def _ref_pad_h(x):
    return jnp.pad(x, ((0, 0), (1, 1), (0, 0)))


def ref_forward(token_ids, p):
    x = jnp.take(p["embed"], token_ids, axis=0)
    m = _ref_conv3(x, p["w_region"], p["b_region"])
    y = _ref_conv3(_ref_pad_h(m), p["w_conv"], p["b_conv"], relu_in=True)
    y = _ref_conv3(_ref_pad_h(y), p["w_conv"], p["b_conv"], relu_in=True) + m
    while y.shape[1] > 2:
        px = _ref_maxpool3s2(y)
        z = _ref_conv3(_ref_pad_h(px), p["w_conv"], p["b_conv"], relu_in=True)
        y = _ref_conv3(_ref_pad_h(z), p["w_conv"], p["b_conv"], relu_in=True) + px
    if y.shape[1] == 2:
        y = y.max(axis=1, keepdims=True)
    y = y[:, 0, :]
    return jnp.dot(y, p["w_fc"]) + p["b_fc"]


# ------------------------------ params ---------------------------------------
def init_params(key):
    ks = jax.random.split(key, 7)
    embed = jax.random.normal(ks[0], (VOCAB, EMBED_DIM), jnp.float32) * 0.5
    embed = embed.at[1].set(0.0)  # padding_idx=1
    return dict(
        embed=embed,
        # conv_region: Conv2d(1, K, (3, E)) -> (3, E, K) window-stacked weights
        w_region=jax.random.normal(ks[1], (3, EMBED_DIM, KERNEL_NUM), jnp.float32) * 0.05,
        b_region=jax.random.normal(ks[2], (1, KERNEL_NUM), jnp.float32) * 0.05,
        # conv: Conv2d(K, K, (3, 1)) -> (3, K, K)
        w_conv=jax.random.normal(ks[3], (3, KERNEL_NUM, KERNEL_NUM), jnp.float32) * 0.05,
        b_conv=jax.random.normal(ks[4], (1, KERNEL_NUM), jnp.float32) * 0.05,
        # fc: Linear(K, Cla) -> (K, Cla)
        w_fc=jax.random.normal(ks[5], (KERNEL_NUM, N_CLASSES), jnp.float32) * 0.05,
        b_fc=jax.random.normal(ks[6], (1, N_CLASSES), jnp.float32) * 0.05,
    )


if __name__ == "__main__":
    key = jax.random.PRNGKey(0)
    pk, ik = jax.random.split(key)
    params = init_params(pk)
    token_ids = jax.random.randint(ik, (BATCH, SEQ_LEN), 0, VOCAB)

    kparams = prepare_params(params)       # one-time weight pad/pack/bf16 cast
    fwd = jax.jit(dpcnn_forward)

    out = fwd(token_ids, params["embed"], kparams)
    out = jax.block_until_ready(out)
    assert out.shape == (BATCH, N_CLASSES), out.shape

    ref = ref_forward(token_ids, params)
    # bf16 MXU operands (f32 accumulation) vs pure-f32 reference -> loose tol.
    if not jnp.allclose(out, ref, atol=5e-2, rtol=5e-2):
        raise AssertionError(f"mismatch: max abs diff {jnp.max(jnp.abs(out - ref))}")

    print("KERNEL_OK")
</pallas_src>

<mosaic_0001>
module attributes {stable_mosaic.version = 11 : i64} {
  func.func @_dpcnn_kernel(%arg0: memref<28x96xf32, #tpu.memory_space<vmem>>, %arg1: memref<96x256xbf16, #tpu.memory_space<vmem>>, %arg2: memref<1x256xf32, #tpu.memory_space<vmem>>, %arg3: memref<768x256xbf16, #tpu.memory_space<vmem>>, %arg4: memref<1x256xf32, #tpu.memory_space<vmem>>, %arg5: memref<256x4xf32, #tpu.memory_space<vmem>>, %arg6: memref<1x4xf32, #tpu.memory_space<vmem>>, %arg7: memref<2x4xf32, #tpu.memory_space<vmem>>) attributes {dimension_semantics = [], scalar_prefetch = 0 : i64, scratch_operands = 0 : i64, tpu.core_type = #tpu.core_type<tc>} {
    %c0 = arith.constant 0 : index
    %c0_0 = arith.constant 0 : index
    %0 = vector.load %arg1[%c0, %c0_0] : memref<96x256xbf16, #tpu.memory_space<vmem>>, vector<96x256xbf16>
    %c0_1 = arith.constant 0 : index
    %c0_2 = arith.constant 0 : index
    %1 = vector.load %arg2[%c0_1, %c0_2] : memref<1x256xf32, #tpu.memory_space<vmem>>, vector<1x256xf32>
    %c0_3 = arith.constant 0 : index
    %c0_4 = arith.constant 0 : index
    %2 = vector.load %arg3[%c0_3, %c0_4] : memref<768x256xbf16, #tpu.memory_space<vmem>>, vector<768x256xbf16>
    %c0_5 = arith.constant 0 : index
    %c0_6 = arith.constant 0 : index
    %3 = vector.load %arg4[%c0_5, %c0_6] : memref<1x256xf32, #tpu.memory_space<vmem>>, vector<1x256xf32>
    %c0_7 = arith.constant 0 : index
    %c0_8 = arith.constant 0 : index
    %4 = vector.load %arg0[%c0_7, %c0_8] : memref<28x96xf32, #tpu.memory_space<vmem>>, vector<28x96xf32>
    %5 = arith.truncf %4 : vector<28x96xf32> to vector<28x96xbf16>
    %cst = arith.constant dense<0.000000e+00> : vector<28x256xf32>
    %6 = tpu.matmul %5, %0, %cst {dimension_numbers = #tpu.dot_dimension_numbers<[1], [0], [0], [1], [0, 0, 1, 1], [], []>} : vector<28x96xbf16>, vector<96x256xbf16>, vector<28x256xf32> -> vector<28x256xf32>
    %7 = vector.broadcast %1 : vector<1x256xf32> to vector<28x256xf32>
    %8 = arith.addf %6, %7 : vector<28x256xf32>
    %cst_9 = arith.constant 0.000000e+00 : f32
    %9 = vector.broadcast %cst_9 : f32 to vector<28x256xf32>
    %10 = arith.maximumf %8, %9 : vector<28x256xf32>
    %cst_10 = arith.constant 0.000000e+00 : f32
    %11 = vector.broadcast %cst_10 : f32 to vector<1x256xf32>
    %12 = vector.extract_strided_slice %10 {offsets = [0, 0], sizes = [14, 256], strides = [1, 1]} : vector<28x256xf32> to vector<14x256xf32>
    %13 = vector.extract_strided_slice %10 {offsets = [14, 0], sizes = [14, 256], strides = [1, 1]} : vector<28x256xf32> to vector<14x256xf32>
    %14 = tpu.concatenate %11, %12, %11, %11, %13, %11 in 0 : vector<1x256xf32>, vector<14x256xf32>, vector<1x256xf32>, vector<1x256xf32>, vector<14x256xf32>, vector<1x256xf32> -> vector<32x256xf32>
    %15 = vector.extract_strided_slice %14 {offsets = [0, 0], sizes = [30, 256], strides = [1, 1]} : vector<32x256xf32> to vector<30x256xf32>
    %16 = vector.extract_strided_slice %14 {offsets = [1, 0], sizes = [30, 256], strides = [1, 1]} : vector<32x256xf32> to vector<30x256xf32>
    %17 = vector.extract_strided_slice %14 {offsets = [2, 0], sizes = [30, 256], strides = [1, 1]} : vector<32x256xf32> to vector<30x256xf32>
    %18 = tpu.concatenate %15, %16, %17 in 1 : vector<30x256xf32>, vector<30x256xf32>, vector<30x256xf32> -> vector<30x768xf32>
    %19 = arith.truncf %18 : vector<30x768xf32> to vector<30x768xbf16>
    %cst_11 = arith.constant dense<0.000000e+00> : vector<30x256xf32>
    %20 = tpu.matmul %19, %2, %cst_11 {dimension_numbers = #tpu.dot_dimension_numbers<[1], [0], [0], [1], [0, 0, 1, 1], [], []>} : vector<30x768xbf16>, vector<768x256xbf16>, vector<30x256xf32> -> vector<30x256xf32>
    %21 = vector.broadcast %3 : vector<1x256xf32> to vector<30x256xf32>
    %22 = arith.addf %20, %21 : vector<30x256xf32>
    %23 = vector.extract_strided_slice %22 {offsets = [0, 0], sizes = [14, 256], strides = [1, 1]} : vector<30x256xf32> to vector<14x256xf32>
    %24 = vector.extract_strided_slice %22 {offsets = [16, 0], sizes = [14, 256], strides = [1, 1]} : vector<30x256xf32> to vector<14x256xf32>
    %25 = tpu.concatenate %23, %24 in 0 : vector<14x256xf32>, vector<14x256xf32> -> vector<28x256xf32>
    %cst_12 = arith.constant 0.000000e+00 : f32
    %26 = vector.broadcast %cst_12 : f32 to vector<28x256xf32>
    %27 = arith.maximumf %25, %26 : vector<28x256xf32>
    %cst_13 = arith.constant 0.000000e+00 : f32
    %28 = vector.broadcast %cst_13 : f32 to vector<1x256xf32>
    %29 = vector.extract_strided_slice %27 {offsets = [0, 0], sizes = [14, 256], strides = [1, 1]} : vector<28x256xf32> to vector<14x256xf32>
    %30 = vector.extract_strided_slice %27 {offsets = [14, 0], sizes = [14, 256], strides = [1, 1]} : vector<28x256xf32> to vector<14x256xf32>
    %31 = tpu.concatenate %28, %29, %28, %28, %30, %28 in 0 : vector<1x256xf32>, vector<14x256xf32>, vector<1x256xf32>, vector<1x256xf32>, vector<14x256xf32>, vector<1x256xf32> -> vector<32x256xf32>
    %32 = vector.extract_strided_slice %31 {offsets = [0, 0], sizes = [30, 256], strides = [1, 1]} : vector<32x256xf32> to vector<30x256xf32>
    %33 = vector.extract_strided_slice %31 {offsets = [1, 0], sizes = [30, 256], strides = [1, 1]} : vector<32x256xf32> to vector<30x256xf32>
    %34 = vector.extract_strided_slice %31 {offsets = [2, 0], sizes = [30, 256], strides = [1, 1]} : vector<32x256xf32> to vector<30x256xf32>
    %35 = tpu.concatenate %32, %33, %34 in 1 : vector<30x256xf32>, vector<30x256xf32>, vector<30x256xf32> -> vector<30x768xf32>
    %36 = arith.truncf %35 : vector<30x768xf32> to vector<30x768xbf16>
    %cst_14 = arith.constant dense<0.000000e+00> : vector<30x256xf32>
    %37 = tpu.matmul %36, %2, %cst_14 {dimension_numbers = #tpu.dot_dimension_numbers<[1], [0], [0], [1], [0, 0, 1, 1], [], []>} : vector<30x768xbf16>, vector<768x256xbf16>, vector<30x256xf32> -> vector<30x256xf32>
    %38 = vector.broadcast %3 : vector<1x256xf32> to vector<30x256xf32>
    %39 = arith.addf %37, %38 : vector<30x256xf32>
    %40 = vector.extract_strided_slice %39 {offsets = [0, 0], sizes = [14, 256], strides = [1, 1]} : vector<30x256xf32> to vector<14x256xf32>
    %41 = vector.extract_strided_slice %39 {offsets = [16, 0], sizes = [14, 256], strides = [1, 1]} : vector<30x256xf32> to vector<14x256xf32>
    %42 = tpu.concatenate %40, %41 in 0 : vector<14x256xf32>, vector<14x256xf32> -> vector<28x256xf32>
    %43 = arith.addf %42, %8 : vector<28x256xf32>
    %44 = vector.extract_strided_slice %43 {offsets = [0, 0], sizes = [1, 256], strides = [1, 1]} : vector<28x256xf32> to vector<1x256xf32>
    %45 = vector.extract_strided_slice %43 {offsets = [1, 0], sizes = [1, 256], strides = [1, 1]} : vector<28x256xf32> to vector<1x256xf32>
    %46 = vector.extract_strided_slice %43 {offsets = [2, 0], sizes = [1, 256], strides = [1, 1]} : vector<28x256xf32> to vector<1x256xf32>
    %47 = arith.maximumf %44, %45 : vector<1x256xf32>
    %48 = arith.maximumf %47, %46 : vector<1x256xf32>
    %49 = vector.extract_strided_slice %43 {offsets = [2, 0], sizes = [1, 256], strides = [1, 1]} : vector<28x256xf32> to vector<1x256xf32>
    %50 = vector.extract_strided_slice %43 {offsets = [3, 0], sizes = [1, 256], strides = [1, 1]} : vector<28x256xf32> to vector<1x256xf32>
    %51 = vector.extract_strided_slice %43 {offsets = [4, 0], sizes = [1, 256], strides = [1, 1]} : vector<28x256xf32> to vector<1x256xf32>
    %52 = arith.maximumf %49, %50 : vector<1x256xf32>
    %53 = arith.maximumf %52, %51 : vector<1x256xf32>
    %54 = vector.extract_strided_slice %43 {offsets = [4, 0], sizes = [1, 256], strides = [1, 1]} : vector<28x256xf32> to vector<1x256xf32>
    %55 = vector.extract_strided_slice %43 {offsets = [5, 0], sizes = [1, 256], strides = [1, 1]} : vector<28x256xf32> to vector<1x256xf32>
    %56 = vector.extract_strided_slice %43 {offsets = [6, 0], sizes = [1, 256], strides = [1, 1]} : vector<28x256xf32> to vector<1x256xf32>
    %57 = arith.maximumf %54, %55 : vector<1x256xf32>
    %58 = arith.maximumf %57, %56 : vector<1x256xf32>
    %59 = vector.extract_strided_slice %43 {offsets = [6, 0], sizes = [1, 256], strides = [1, 1]} : vector<28x256xf32> to vector<1x256xf32>
    %60 = vector.extract_strided_slice %43 {offsets = [7, 0], sizes = [1, 256], strides = [1, 1]} : vector<28x256xf32> to vector<1x256xf32>
    %61 = vector.extract_strided_slice %43 {offsets = [8, 0], sizes = [1, 256], strides = [1, 1]} : vector<28x256xf32> to vector<1x256xf32>
    %62 = arith.maximumf %59, %60 : vector<1x256xf32>
    %63 = arith.maximumf %62, %61 : vector<1x256xf32>
    %64 = vector.extract_strided_slice %43 {offsets = [8, 0], sizes = [1, 256], strides = [1, 1]} : vector<28x256xf32> to vector<1x256xf32>
    %65 = vector.extract_strided_slice %43 {offsets = [9, 0], sizes = [1, 256], strides = [1, 1]} : vector<28x256xf32> to vector<1x256xf32>
    %66 = vector.extract_strided_slice %43 {offsets = [10, 0], sizes = [1, 256], strides = [1, 1]} : vector<28x256xf32> to vector<1x256xf32>
    %67 = arith.maximumf %64, %65 : vector<1x256xf32>
    %68 = arith.maximumf %67, %66 : vector<1x256xf32>
    %69 = vector.extract_strided_slice %43 {offsets = [10, 0], sizes = [1, 256], strides = [1, 1]} : vector<28x256xf32> to vector<1x256xf32>
    %70 = vector.extract_strided_slice %43 {offsets = [11, 0], sizes = [1, 256], strides = [1, 1]} : vector<28x256xf32> to vector<1x256xf32>
    %71 = vector.extract_strided_slice %43 {offsets = [12, 0], sizes = [1, 256], strides = [1, 1]} : vector<28x256xf32> to vector<1x256xf32>
    %72 = arith.maximumf %69, %70 : vector<1x256xf32>
    %73 = arith.maximumf %72, %71 : vector<1x256xf32>
    %74 = vector.extract_strided_slice %43 {offsets = [14, 0], sizes = [1, 256], strides = [1, 1]} : vector<28x256xf32> to vector<1x256xf32>
    %75 = vector.extract_strided_slice %43 {offsets = [15, 0], sizes = [1, 256], strides = [1, 1]} : vector<28x256xf32> to vector<1x256xf32>
    %76 = vector.extract_strided_slice %43 {offsets = [16, 0], sizes = [1, 256], strides = [1, 1]} : vector<28x256xf32> to vector<1x256xf32>
    %77 = arith.maximumf %74, %75 : vector<1x256xf32>
    %78 = arith.maximumf %77, %76 : vector<1x256xf32>
    %79 = vector.extract_strided_slice %43 {offsets = [16, 0], sizes = [1, 256], strides = [1, 1]} : vector<28x256xf32> to vector<1x256xf32>
    %80 = vector.extract_strided_slice %43 {offsets = [17, 0], sizes = [1, 256], strides = [1, 1]} : vector<28x256xf32> to vector<1x256xf32>
    %81 = vector.extract_strided_slice %43 {offsets = [18, 0], sizes = [1, 256], strides = [1, 1]} : vector<28x256xf32> to vector<1x256xf32>
    %82 = arith.maximumf %79, %80 : vector<1x256xf32>
    %83 = arith.maximumf %82, %81 : vector<1x256xf32>
    %84 = vector.extract_strided_slice %43 {offsets = [18, 0], sizes = [1, 256], strides = [1, 1]} : vector<28x256xf32> to vector<1x256xf32>
    %85 = vector.extract_strided_slice %43 {offsets = [19, 0], sizes = [1, 256], strides = [1, 1]} : vector<28x256xf32> to vector<1x256xf32>
    %86 = vector.extract_strided_slice %43 {offsets = [20, 0], sizes = [1, 256], strides = [1, 1]} : vector<28x256xf32> to vector<1x256xf32>
    %87 = arith.maximumf %84, %85 : vector<1x256xf32>
    %88 = arith.maximumf %87, %86 : vector<1x256xf32>
    %89 = vector.extract_strided_slice %43 {offsets = [20, 0], sizes = [1, 256], strides = [1, 1]} : vector<28x256xf32> to vector<1x256xf32>
    %90 = vector.extract_strided_slice %43 {offsets = [21, 0], sizes = [1, 256], strides = [1, 1]} : vector<28x256xf32> to vector<1x256xf32>
    %91 = vector.extract_strided_slice %43 {offsets = [22, 0], sizes = [1, 256], strides = [1, 1]} : vector<28x256xf32> to vector<1x256xf32>
    %92 = arith.maximumf %89, %90 : vector<1x256xf32>
    %93 = arith.maximumf %92, %91 : vector<1x256xf32>
    %94 = vector.extract_strided_slice %43 {offsets = [22, 0], sizes = [1, 256], strides = [1, 1]} : vector<28x256xf32> to vector<1x256xf32>
    %95 = vector.extract_strided_slice %43 {offsets = [23, 0], sizes = [1, 256], strides = [1, 1]} : vector<28x256xf32> to vector<1x256xf32>
    %96 = vector.extract_strided_slice %43 {offsets = [24, 0], sizes = [1, 256], strides = [1, 1]} : vector<28x256xf32> to vector<1x256xf32>
    %97 = arith.maximumf %94, %95 : vector<1x256xf32>
    %98 = arith.maximumf %97, %96 : vector<1x256xf32>
    %99 = vector.extract_strided_slice %43 {offsets = [24, 0], sizes = [1, 256], strides = [1, 1]} : vector<28x256xf32> to vector<1x256xf32>
    %100 = vector.extract_strided_slice %43 {offsets = [25, 0], sizes = [1, 256], strides = [1, 1]} : vector<28x256xf32> to vector<1x256xf32>
    %101 = vector.extract_strided_slice %43 {offsets = [26, 0], sizes = [1, 256], strides = [1, 1]} : vector<28x256xf32> to vector<1x256xf32>
    %102 = arith.maximumf %99, %100 : vector<1x256xf32>
    %103 = arith.maximumf %102, %101 : vector<1x256xf32>
    %104 = tpu.concatenate %48, %53, %58, %63, %68, %73, %78, %83, %88, %93, %98, %103 in 0 : vector<1x256xf32>, vector<1x256xf32>, vector<1x256xf32>, vector<1x256xf32>, vector<1x256xf32>, vector<1x256xf32>, vector<1x256xf32>, vector<1x256xf32>, vector<1x256xf32>, vector<1x256xf32>, vector<1x256xf32>, vector<1x256xf32> -> vector<12x256xf32>
    %cst_15 = arith.constant 0.000000e+00 : f32
    %105 = vector.broadcast %cst_15 : f32 to vector<12x256xf32>
    %106 = arith.maximumf %104, %105 : vector<12x256xf32>
    %cst_16 = arith.constant 0.000000e+00 : f32
    %107 = vector.broadcast %cst_16 : f32 to vector<1x256xf32>
    %108 = vector.extract_strided_slice %106 {offsets = [0, 0], sizes = [6, 256], strides = [1, 1]} : vector<12x256xf32> to vector<6x256xf32>
    %109 = vector.extract_strided_slice %106 {offsets = [6, 0], sizes = [6, 256], strides = [1, 1]} : vector<12x256xf32> to vector<6x256xf32>
    %110 = tpu.concatenate %107, %108, %107, %107, %109, %107 in 0 : vector<1x256xf32>, vector<6x256xf32>, vector<1x256xf32>, vector<1x256xf32>, vector<6x256xf32>, vector<1x256xf32> -> vector<16x256xf32>
    %111 = vector.extract_strided_slice %110 {offsets = [0, 0], sizes = [14, 256], strides = [1, 1]} : vector<16x256xf32> to vector<14x256xf32>
    %112 = vector.extract_strided_slice %110 {offsets = [1, 0], sizes = [14, 256], strides = [1, 1]} : vector<16x256xf32> to vector<14x256xf32>
    %113 = vector.extract_strided_slice %110 {offsets = [2, 0], sizes = [14, 256], strides = [1, 1]} : vector<16x256xf32> to vector<14x256xf32>
    %114 = tpu.concatenate %111, %112, %113 in 1 : vector<14x256xf32>, vector<14x256xf32>, vector<14x256xf32> -> vector<14x768xf32>
    %115 = arith.truncf %114 : vector<14x768xf32> to vector<14x768xbf16>
    %cst_17 = arith.constant dense<0.000000e+00> : vector<14x256xf32>
    %116 = tpu.matmul %115, %2, %cst_17 {dimension_numbers = #tpu.dot_dimension_numbers<[1], [0], [0], [1], [0, 0, 1, 1], [], []>} : vector<14x768xbf16>, vector<768x256xbf16>, vector<14x256xf32> -> vector<14x256xf32>
    %117 = vector.broadcast %3 : vector<1x256xf32> to vector<14x256xf32>
    %118 = arith.addf %116, %117 : vector<14x256xf32>
    %119 = vector.extract_strided_slice %118 {offsets = [0, 0], sizes = [6, 256], strides = [1, 1]} : vector<14x256xf32> to vector<6x256xf32>
    %120 = vector.extract_strided_slice %118 {offsets = [8, 0], sizes = [6, 256], strides = [1, 1]} : vector<14x256xf32> to vector<6x256xf32>
    %121 = tpu.concatenate %119, %120 in 0 : vector<6x256xf32>, vector<6x256xf32> -> vector<12x256xf32>
    %cst_18 = arith.constant 0.000000e+00 : f32
    %122 = vector.broadcast %cst_18 : f32 to vector<12x256xf32>
    %123 = arith.maximumf %121, %122 : vector<12x256xf32>
    %cst_19 = arith.constant 0.000000e+00 : f32
    %124 = vector.broadcast %cst_19 : f32 to vector<1x256xf32>
    %125 = vector.extract_strided_slice %123 {offsets = [0, 0], sizes = [6, 256], strides = [1, 1]} : vector<12x256xf32> to vector<6x256xf32>
    %126 = vector.extract_strided_slice %123 {offsets = [6, 0], sizes = [6, 256], strides = [1, 1]} : vector<12x256xf32> to vector<6x256xf32>
    %127 = tpu.concatenate %124, %125, %124, %124, %126, %124 in 0 : vector<1x256xf32>, vector<6x256xf32>, vector<1x256xf32>, vector<1x256xf32>, vector<6x256xf32>, vector<1x256xf32> -> vector<16x256xf32>
    %128 = vector.extract_strided_slice %127 {offsets = [0, 0], sizes = [14, 256], strides = [1, 1]} : vector<16x256xf32> to vector<14x256xf32>
    %129 = vector.extract_strided_slice %127 {offsets = [1, 0], sizes = [14, 256], strides = [1, 1]} : vector<16x256xf32> to vector<14x256xf32>
    %130 = vector.extract_strided_slice %127 {offsets = [2, 0], sizes = [14, 256], strides = [1, 1]} : vector<16x256xf32> to vector<14x256xf32>
    %131 = tpu.concatenate %128, %129, %130 in 1 : vector<14x256xf32>, vector<14x256xf32>, vector<14x256xf32> -> vector<14x768xf32>
    %132 = arith.truncf %131 : vector<14x768xf32> to vector<14x768xbf16>
    %cst_20 = arith.constant dense<0.000000e+00> : vector<14x256xf32>
    %133 = tpu.matmul %132, %2, %cst_20 {dimension_numbers = #tpu.dot_dimension_numbers<[1], [0], [0], [1], [0, 0, 1, 1], [], []>} : vector<14x768xbf16>, vector<768x256xbf16>, vector<14x256xf32> -> vector<14x256xf32>
    %134 = vector.broadcast %3 : vector<1x256xf32> to vector<14x256xf32>
    %135 = arith.addf %133, %134 : vector<14x256xf32>
    %136 = vector.extract_strided_slice %135 {offsets = [0, 0], sizes = [6, 256], strides = [1, 1]} : vector<14x256xf32> to vector<6x256xf32>
    %137 = vector.extract_strided_slice %135 {offsets = [8, 0], sizes = [6, 256], strides = [1, 1]} : vector<14x256xf32> to vector<6x256xf32>
    %138 = tpu.concatenate %136, %137 in 0 : vector<6x256xf32>, vector<6x256xf32> -> vector<12x256xf32>
    %139 = arith.addf %138, %104 : vector<12x256xf32>
    %140 = vector.extract_strided_slice %139 {offsets = [0, 0], sizes = [1, 256], strides = [1, 1]} : vector<12x256xf32> to vector<1x256xf32>
    %141 = vector.extract_strided_slice %139 {offsets = [1, 0], sizes = [1, 256], strides = [1, 1]} : vector<12x256xf32> to vector<1x256xf32>
    %142 = vector.extract_strided_slice %139 {offsets = [2, 0], sizes = [1, 256], strides = [1, 1]} : vector<12x256xf32> to vector<1x256xf32>
    %143 = arith.maximumf %140, %141 : vector<1x256xf32>
    %144 = arith.maximumf %143, %142 : vector<1x256xf32>
    %145 = vector.extract_strided_slice %139 {offsets = [2, 0], sizes = [1, 256], strides = [1, 1]} : vector<12x256xf32> to vector<1x256xf32>
    %146 = vector.extract_strided_slice %139 {offsets = [3, 0], sizes = [1, 256], strides = [1, 1]} : vector<12x256xf32> to vector<1x256xf32>
    %147 = vector.extract_strided_slice %139 {offsets = [4, 0], sizes = [1, 256], strides = [1, 1]} : vector<12x256xf32> to vector<1x256xf32>
    %148 = arith.maximumf %145, %146 : vector<1x256xf32>
    %149 = arith.maximumf %148, %147 : vector<1x256xf32>
    %150 = vector.extract_strided_slice %139 {offsets = [6, 0], sizes = [1, 256], strides = [1, 1]} : vector<12x256xf32> to vector<1x256xf32>
    %151 = vector.extract_strided_slice %139 {offsets = [7, 0], sizes = [1, 256], strides = [1, 1]} : vector<12x256xf32> to vector<1x256xf32>
    %152 = vector.extract_strided_slice %139 {offsets = [8, 0], sizes = [1, 256], strides = [1, 1]} : vector<12x256xf32> to vector<1x256xf32>
    %153 = arith.maximumf %150, %151 : vector<1x256xf32>
    %154 = arith.maximumf %153, %152 : vector<1x256xf32>
    %155 = vector.extract_strided_slice %139 {offsets = [8, 0], sizes = [1, 256], strides = [1, 1]} : vector<12x256xf32> to vector<1x256xf32>
    %156 = vector.extract_strided_slice %139 {offsets = [9, 0], sizes = [1, 256], strides = [1, 1]} : vector<12x256xf32> to vector<1x256xf32>
    %157 = vector.extract_strided_slice %139 {offsets = [10, 0], sizes = [1, 256], strides = [1, 1]} : vector<12x256xf32> to vector<1x256xf32>
    %158 = arith.maximumf %155, %156 : vector<1x256xf32>
    %159 = arith.maximumf %158, %157 : vector<1x256xf32>
    %160 = tpu.concatenate %144, %149, %154, %159 in 0 : vector<1x256xf32>, vector<1x256xf32>, vector<1x256xf32>, vector<1x256xf32> -> vector<4x256xf32>
    %cst_21 = arith.constant 0.000000e+00 : f32
    %161 = vector.broadcast %cst_21 : f32 to vector<4x256xf32>
    %162 = arith.maximumf %160, %161 : vector<4x256xf32>
    %cst_22 = arith.constant 0.000000e+00 : f32
    %163 = vector.broadcast %cst_22 : f32 to vector<1x256xf32>
    %164 = vector.extract_strided_slice %162 {offsets = [0, 0], sizes = [2, 256], strides = [1, 1]} : vector<4x256xf32> to vector<2x256xf32>
    %165 = vector.extract_strided_slice %162 {offsets = [2, 0], sizes = [2, 256], strides = [1, 1]} : vector<4x256xf32> to vector<2x256xf32>
    %166 = tpu.concatenate %163, %164, %163, %163, %165, %163 in 0 : vector<1x256xf32>, vector<2x256xf32>, vector<1x256xf32>, vector<1x256xf32>, vector<2x256xf32>, vector<1x256xf32> -> vector<8x256xf32>
    %167 = vector.extract_strided_slice %166 {offsets = [0, 0], sizes = [6, 256], strides = [1, 1]} : vector<8x256xf32> to vector<6x256xf32>
    %168 = vector.extract_strided_slice %166 {offsets = [1, 0], sizes = [6, 256], strides = [1, 1]} : vector<8x256xf32> to vector<6x256xf32>
    %169 = vector.extract_strided_slice %166 {offsets = [2, 0], sizes = [6, 256], strides = [1, 1]} : vector<8x256xf32> to vector<6x256xf32>
    %170 = tpu.concatenate %167, %168, %169 in 1 : vector<6x256xf32>, vector<6x256xf32>, vector<6x256xf32> -> vector<6x768xf32>
    %171 = arith.truncf %170 : vector<6x768xf32> to vector<6x768xbf16>
    %cst_23 = arith.constant dense<0.000000e+00> : vector<6x256xf32>
    %172 = tpu.matmul %171, %2, %cst_23 {dimension_numbers = #tpu.dot_dimension_numbers<[1], [0], [0], [1], [0, 0, 1, 1], [], []>} : vector<6x768xbf16>, vector<768x256xbf16>, vector<6x256xf32> -> vector<6x256xf32>
    %173 = vector.broadcast %3 : vector<1x256xf32> to vector<6x256xf32>
    %174 = arith.addf %172, %173 : vector<6x256xf32>
    %175 = vector.extract_strided_slice %174 {offsets = [0, 0], sizes = [2, 256], strides = [1, 1]} : vector<6x256xf32> to vector<2x256xf32>
    %176 = vector.extract_strided_slice %174 {offsets = [4, 0], sizes = [2, 256], strides = [1, 1]} : vector<6x256xf32> to vector<2x256xf32>
    %177 = tpu.concatenate %175, %176 in 0 : vector<2x256xf32>, vector<2x256xf32> -> vector<4x256xf32>
    %cst_24 = arith.constant 0.000000e+00 : f32
    %178 = vector.broadcast %cst_24 : f32 to vector<4x256xf32>
    %179 = arith.maximumf %177, %178 : vector<4x256xf32>
    %cst_25 = arith.constant 0.000000e+00 : f32
    %180 = vector.broadcast %cst_25 : f32 to vector<1x256xf32>
    %181 = vector.extract_strided_slice %179 {offsets = [0, 0], sizes = [2, 256], strides = [1, 1]} : vector<4x256xf32> to vector<2x256xf32>
    %182 = vector.extract_strided_slice %179 {offsets = [2, 0], sizes = [2, 256], strides = [1, 1]} : vector<4x256xf32> to vector<2x256xf32>
    %183 = tpu.concatenate %180, %181, %180, %180, %182, %180 in 0 : vector<1x256xf32>, vector<2x256xf32>, vector<1x256xf32>, vector<1x256xf32>, vector<2x256xf32>, vector<1x256xf32> -> vector<8x256xf32>
    %184 = vector.extract_strided_slice %183 {offsets = [0, 0], sizes = [6, 256], strides = [1, 1]} : vector<8x256xf32> to vector<6x256xf32>
    %185 = vector.extract_strided_slice %183 {offsets = [1, 0], sizes = [6, 256], strides = [1, 1]} : vector<8x256xf32> to vector<6x256xf32>
    %186 = vector.extract_strided_slice %183 {offsets = [2, 0], sizes = [6, 256], strides = [1, 1]} : vector<8x256xf32> to vector<6x256xf32>
    %187 = tpu.concatenate %184, %185, %186 in 1 : vector<6x256xf32>, vector<6x256xf32>, vector<6x256xf32> -> vector<6x768xf32>
    %188 = arith.truncf %187 : vector<6x768xf32> to vector<6x768xbf16>
    %cst_26 = arith.constant dense<0.000000e+00> : vector<6x256xf32>
    %189 = tpu.matmul %188, %2, %cst_26 {dimension_numbers = #tpu.dot_dimension_numbers<[1], [0], [0], [1], [0, 0, 1, 1], [], []>} : vector<6x768xbf16>, vector<768x256xbf16>, vector<6x256xf32> -> vector<6x256xf32>
    %190 = vector.broadcast %3 : vector<1x256xf32> to vector<6x256xf32>
    %191 = arith.addf %189, %190 : vector<6x256xf32>
    %192 = vector.extract_strided_slice %191 {offsets = [0, 0], sizes = [2, 256], strides = [1, 1]} : vector<6x256xf32> to vector<2x256xf32>
    %193 = vector.extract_strided_slice %191 {offsets = [4, 0], sizes = [2, 256], strides = [1, 1]} : vector<6x256xf32> to vector<2x256xf32>
    %194 = tpu.concatenate %192, %193 in 0 : vector<2x256xf32>, vector<2x256xf32> -> vector<4x256xf32>
    %195 = arith.addf %194, %160 : vector<4x256xf32>
    %196 = vector.extract_strided_slice %195 {offsets = [0, 0], sizes = [1, 256], strides = [1, 1]} : vector<4x256xf32> to vector<1x256xf32>
    %197 = vector.extract_strided_slice %195 {offsets = [1, 0], sizes = [1, 256], strides = [1, 1]} : vector<4x256xf32> to vector<1x256xf32>
    %198 = arith.maximumf %196, %197 : vector<1x256xf32>
    %199 = vector.extract_strided_slice %195 {offsets = [2, 0], sizes = [1, 256], strides = [1, 1]} : vector<4x256xf32> to vector<1x256xf32>
    %200 = vector.extract_strided_slice %195 {offsets = [3, 0], sizes = [1, 256], strides = [1, 1]} : vector<4x256xf32> to vector<1x256xf32>
    %201 = arith.maximumf %199, %200 : vector<1x256xf32>
    %202 = tpu.concatenate %198, %201 in 0 : vector<1x256xf32>, vector<1x256xf32> -> vector<2x256xf32>
    %c0_27 = arith.constant 0 : index
    %c0_28 = arith.constant 0 : index
    %203 = vector.load %arg5[%c0_27, %c0_28] : memref<256x4xf32, #tpu.memory_space<vmem>>, vector<256x4xf32>
    %cst_29 = arith.constant dense<0.000000e+00> : vector<2x4xf32>
    %204 = tpu.matmul %202, %203, %cst_29 {dimension_numbers = #tpu.dot_dimension_numbers<[1], [0], [0], [1], [0, 0, 1, 1], [], []>} : vector<2x256xf32>, vector<256x4xf32>, vector<2x4xf32> -> vector<2x4xf32>
    %c0_30 = arith.constant 0 : index
    %c0_31 = arith.constant 0 : index
    %205 = vector.load %arg6[%c0_30, %c0_31] : memref<1x4xf32, #tpu.memory_space<vmem>>, vector<1x4xf32>
    %206 = vector.broadcast %205 : vector<1x4xf32> to vector<2x4xf32>
    %207 = arith.addf %204, %206 : vector<2x4xf32>
    %c0_32 = arith.constant 0 : index
    %c0_33 = arith.constant 0 : index
    %208 = vector.load %arg7[%c0_32, %c0_33] : memref<2x4xf32, #tpu.memory_space<vmem>>, vector<2x4xf32>
    tpu.vector_store %arg7[%c0_32, %c0_33], %207 {strides = array<i32>} : memref<2x4xf32, #tpu.memory_space<vmem>>, vector<2x4xf32>,
    return
  }
}

</mosaic_0001>

<llo_original>
// kernel: dpcnn_forward.1
$region0: #{dpcnn_forward.1}
  #allocation0 [shape = 'u32[]', space=smem, size = 0x4, offset = 0x4, fixed_abs, tag = 'smem constant byte address 0x4 - core index']
  #allocation1 [shape = 'u32[144,128]{1,0:T(1,128)}', space=vmem, size = 0x12000, scoped, tag = 'internal scratch']
  %s0 = inlined_call_operand.vmem [shape: f32[28,96], index: 0, kind: input, shape index: {}]
  %s1 = inlined_call_operand.vmem [shape: bf16[96,256], index: 1, kind: input, shape index: {}]
  %s2 = inlined_call_operand.vmem [shape: f32[1,256], index: 2, kind: input, shape index: {}]
  %s3 = inlined_call_operand.vmem [shape: bf16[768,256], index: 3, kind: input, shape index: {}]
  %s4 = inlined_call_operand.vmem [shape: f32[1,256], index: 4, kind: input, shape index: {}]
  %s5 = inlined_call_operand.vmem [shape: f32[256,4], index: 5, kind: input, shape index: {}]
  %s6 = inlined_call_operand.vmem [shape: f32[1,4], index: 6, kind: input, shape index: {}]
  %s7 = inlined_call_operand.hbm [shape: f32[2,4], index: 7, kind: output, shape index: {}]
  %s8 = sld [smem:[#allocation0]]
  $region38: #{dpcnn_forward.1} parent=0
    _
  %s10 = ssub.s32 1, %s8
  %s11 = scalar_select 0, %s10, %s8
  $region1: #{dpcnn_forward.1} parent=0
    #allocation2 [shape = 'u8[1024]{0}', space=vmem, size = 0x400, scoped, tag = 'output window, operand 0, single buffered']
    #allocation3 [shape = 's32[1]{0}', space=sflag, size = 0x4, scoped, tag = 'scoped memory for dpcnn_forward.1']
    %12 = vsyncpa [#allocation3], 0
    // Predicated region
    $region2: #{dpcnn_forward.1} parent=1 // pred_check
      _
    $region3: #{dpcnn_forward.1} parent=1 // pred_check_branch
      %14 = sbr.rel (0) target = $region5
    $region4: #{dpcnn_forward.1} parent=1 // pred_region
      _
    $region5: #{dpcnn_forward.1} parent=1 // pred_fallthru
      _
    // Predicated region
    $region6: #{dpcnn_forward.1} parent=1 // pred_check
      _
    $region7: #{dpcnn_forward.1} parent=1 // pred_check_branch
      %16 = sbr.rel (0) target = $region9
    $region8: #{dpcnn_forward.1} parent=1 // pred_region
      _
    $region9: #{dpcnn_forward.1} parent=1 // pred_fallthru
      _
    // Predicated region
    $region10: #{dpcnn_forward.1} parent=1 // pred_check
      _
    $region11: #{dpcnn_forward.1} parent=1 // pred_check_branch
      %18 = sbr.rel (0) target = $region13
    $region12: #{dpcnn_forward.1} parent=1 // pred_region
      _
    $region13: #{dpcnn_forward.1} parent=1 // pred_fallthru
      _
    // Predicated region
    $region14: #{dpcnn_forward.1} parent=1 // pred_check
      _
    $region15: #{dpcnn_forward.1} parent=1 // pred_check_branch
      %20 = sbr.rel (0) target = $region17
    $region16: #{dpcnn_forward.1} parent=1 // pred_region
      _
    $region17: #{dpcnn_forward.1} parent=1 // pred_fallthru
      _
    // Predicated region
    $region18: #{dpcnn_forward.1} parent=1 // pred_check
      _
    $region19: #{dpcnn_forward.1} parent=1 // pred_check_branch
      %22 = sbr.rel (0) target = $region21
    $region20: #{dpcnn_forward.1} parent=1 // pred_region
      _
    $region21: #{dpcnn_forward.1} parent=1 // pred_fallthru
      _
    // Predicated region
    $region22: #{dpcnn_forward.1} parent=1 // pred_check
      _
    $region23: #{dpcnn_forward.1} parent=1 // pred_check_branch
      %24 = sbr.rel (0) target = $region25
    $region24: #{dpcnn_forward.1} parent=1 // pred_region
      _
    $region25: #{dpcnn_forward.1} parent=1 // pred_fallthru
      _
    // Predicated region
    $region26: #{dpcnn_forward.1} parent=1 // pred_check
      _
    $region27: #{dpcnn_forward.1} parent=1 // pred_check_branch
      %26 = sbr.rel (0) target = $region29
    $region28: #{dpcnn_forward.1} parent=1 // pred_region
      _
    $region29: #{dpcnn_forward.1} parent=1 // pred_fallthru
      _
    %v28 = vld [vmem:[%s1] sm:$0xff]
    %v29 = vld [vmem:[%s1 + $0x8] sm:$0xff]
    %v30 = vld [vmem:[%s1 + $0x10] sm:$0xff]
    %v31 = vld [vmem:[%s1 + $0x18] sm:$0xff]
    %v32 = vld [vmem:[%s1 + $0x20] sm:$0xff]
    %v33 = vld [vmem:[%s1 + $0x28] sm:$0xff]
    %v34 = vld [vmem:[%s1 + $0x30] sm:$0xff]
    %v35 = vld [vmem:[%s1 + $0x38] sm:$0xff]
    %v36 = vld [vmem:[%s1 + $0x40] sm:$0xff]
    %v37 = vld [vmem:[%s1 + $0x48] sm:$0xff]
    %v38 = vld [vmem:[%s1 + $0x50] sm:$0xff]
    %v39 = vld [vmem:[%s1 + $0x58] sm:$0xff]
    %v40 = vld [vmem:[%s2] sm:$0x3]
    %v41 = vld [vmem:[%s3] sm:$0xff]
    %v42 = vld [vmem:[%s3 + $0x8] sm:$0xff]
    %v43 = vld [vmem:[%s3 + $0x10] sm:$0xff]
    %v44 = vld [vmem:[%s3 + $0x18] sm:$0xff]
    %v45 = vld [vmem:[%s3 + $0x20] sm:$0xff]
    %v46 = vld [vmem:[%s3 + $0x28] sm:$0xff]
    %v47 = vld [vmem:[%s3 + $0x30] sm:$0xff]
    %v48 = vld [vmem:[%s3 + $0x38] sm:$0xff]
    %v49 = vld [vmem:[%s3 + $0x40] sm:$0xff]
    %v50 = vld [vmem:[%s3 + $0x48] sm:$0xff]
    %v51 = vld [vmem:[%s3 + $0x50] sm:$0xff]
    %v52 = vld [vmem:[%s3 + $0x58] sm:$0xff]
    %v53 = vld [vmem:[%s3 + $0x60] sm:$0xff]
    %v54 = vld [vmem:[%s3 + $0x68] sm:$0xff]
    %v55 = vld [vmem:[%s3 + $0x70] sm:$0xff]
    %v56 = vld [vmem:[%s3 + $0x78] sm:$0xff]
    %v57 = vld [vmem:[%s3 + $0x80] sm:$0xff]
    %v58 = vld [vmem:[%s3 + $0x88] sm:$0xff]
    %v59 = vld [vmem:[%s3 + $0x90] sm:$0xff]
    %v60 = vld [vmem:[%s3 + $0x98] sm:$0xff]
    %v61 = vld [vmem:[%s3 + $0xa0] sm:$0xff]
    %v62 = vld [vmem:[%s3 + $0xa8] sm:$0xff]
    %v63 = vld [vmem:[%s3 + $0xb0] sm:$0xff]
    %v64 = vld [vmem:[%s3 + $0xb8] sm:$0xff]
    %v65 = vld [vmem:[%s3 + $0xc0] sm:$0xff]
    %v66 = vld [vmem:[%s3 + $0xc8] sm:$0xff]
    %v67 = vld [vmem:[%s3 + $0xd0] sm:$0xff]
    %v68 = vld [vmem:[%s3 + $0xd8] sm:$0xff]
    %v69 = vld [vmem:[%s3 + $0xe0] sm:$0xff]
    %v70 = vld [vmem:[%s3 + $0xe8] sm:$0xff]
    %v71 = vld [vmem:[%s3 + $0xf0] sm:$0xff]
    %v72 = vld [vmem:[%s3 + $0xf8] sm:$0xff]
    %v73 = vld [vmem:[%s3 + $0x100] sm:$0xff]
    %v74 = vld [vmem:[%s3 + $0x108] sm:$0xff]
    %v75 = vld [vmem:[%s3 + $0x110] sm:$0xff]
    %v76 = vld [vmem:[%s3 + $0x118] sm:$0xff]
    %v77 = vld [vmem:[%s3 + $0x120] sm:$0xff]
    %v78 = vld [vmem:[%s3 + $0x128] sm:$0xff]
    %v79 = vld [vmem:[%s3 + $0x130] sm:$0xff]
    %v80 = vld [vmem:[%s3 + $0x138] sm:$0xff]
    %v81 = vld [vmem:[%s3 + $0x140] sm:$0xff]
    %v82 = vld [vmem:[%s3 + $0x148] sm:$0xff]
    %v83 = vld [vmem:[%s3 + $0x150] sm:$0xff]
    %v84 = vld [vmem:[%s3 + $0x158] sm:$0xff]
    %v85 = vld [vmem:[%s3 + $0x160] sm:$0xff]
    %v86 = vld [vmem:[%s3 + $0x168] sm:$0xff]
    %v87 = vld [vmem:[%s3 + $0x170] sm:$0xff]
    %v88 = vld [vmem:[%s3 + $0x178] sm:$0xff]
    %v89 = vld [vmem:[%s3 + $0x180] sm:$0xff]
    %v90 = vld [vmem:[%s3 + $0x188] sm:$0xff]
    %v91 = vld [vmem:[%s3 + $0x190] sm:$0xff]
    %v92 = vld [vmem:[%s3 + $0x198] sm:$0xff]
    %v93 = vld [vmem:[%s3 + $0x1a0] sm:$0xff]
    %v94 = vld [vmem:[%s3 + $0x1a8] sm:$0xff]
    %v95 = vld [vmem:[%s3 + $0x1b0] sm:$0xff]
    %v96 = vld [vmem:[%s3 + $0x1b8] sm:$0xff]
    %v97 = vld [vmem:[%s3 + $0x1c0] sm:$0xff]
    %v98 = vld [vmem:[%s3 + $0x1c8] sm:$0xff]
    %v99 = vld [vmem:[%s3 + $0x1d0] sm:$0xff]
    %v100 = vld [vmem:[%s3 + $0x1d8] sm:$0xff]
    %v101 = vld [vmem:[%s3 + $0x1e0] sm:$0xff]
    %v102 = vld [vmem:[%s3 + $0x1e8] sm:$0xff]
    %v103 = vld [vmem:[%s3 + $0x1f0] sm:$0xff]
    %v104 = vld [vmem:[%s3 + $0x1f8] sm:$0xff]
    %v105 = vld [vmem:[%s3 + $0x200] sm:$0xff]
    %v106 = vld [vmem:[%s3 + $0x208] sm:$0xff]
    %v107 = vld [vmem:[%s3 + $0x210] sm:$0xff]
    %v108 = vld [vmem:[%s3 + $0x218] sm:$0xff]
    %v109 = vld [vmem:[%s3 + $0x220] sm:$0xff]
    %v110 = vld [vmem:[%s3 + $0x228] sm:$0xff]
    %v111 = vld [vmem:[%s3 + $0x230] sm:$0xff]
    %v112 = vld [vmem:[%s3 + $0x238] sm:$0xff]
    %v113 = vld [vmem:[%s3 + $0x240] sm:$0xff]
    %v114 = vld [vmem:[%s3 + $0x248] sm:$0xff]
    %v115 = vld [vmem:[%s3 + $0x250] sm:$0xff]
    %v116 = vld [vmem:[%s3 + $0x258] sm:$0xff]
    %v117 = vld [vmem:[%s3 + $0x260] sm:$0xff]
    %v118 = vld [vmem:[%s3 + $0x268] sm:$0xff]
    %v119 = vld [vmem:[%s3 + $0x270] sm:$0xff]
    %v120 = vld [vmem:[%s3 + $0x278] sm:$0xff]
    %v121 = vld [vmem:[%s3 + $0x280] sm:$0xff]
    %v122 = vld [vmem:[%s3 + $0x288] sm:$0xff]
    %v123 = vld [vmem:[%s3 + $0x290] sm:$0xff]
    %v124 = vld [vmem:[%s3 + $0x298] sm:$0xff]
    %v125 = vld [vmem:[%s3 + $0x2a0] sm:$0xff]
    %v126 = vld [vmem:[%s3 + $0x2a8] sm:$0xff]
    %v127 = vld [vmem:[%s3 + $0x2b0] sm:$0xff]
    %v128 = vld [vmem:[%s3 + $0x2b8] sm:$0xff]
    %v129 = vld [vmem:[%s3 + $0x2c0] sm:$0xff]
    %v130 = vld [vmem:[%s3 + $0x2c8] sm:$0xff]
    %v131 = vld [vmem:[%s3 + $0x2d0] sm:$0xff]
    %v132 = vld [vmem:[%s3 + $0x2d8] sm:$0xff]
    %v133 = vld [vmem:[%s3 + $0x2e0] sm:$0xff]
    %v134 = vld [vmem:[%s3 + $0x2e8] sm:$0xff]
    %v135 = vld [vmem:[%s3 + $0x2f0] sm:$0xff]
    %v136 = vld [vmem:[%s3 + $0x2f8] sm:$0xff]
    %v137 = vld [vmem:[%s4] sm:$0x3]
    %v138 = vld [vmem:[%s0] sm:$0xff]
    %v139 = vld [vmem:[%s0 + $0x8] sm:$0xff]
    %v140 = vld [vmem:[%s0 + $0x10] sm:$0xff]
    %v141 = vld [vmem:[%s0 + $0x18] sm:$0xf]
    %v142 = vpack.c.bf16 %v139, %v138
    %v143 = vpack.c.bf16 %v141, %v140
    %v145 = vlaneseq
    %v146 = vshrl.u32 %v145, 7
    %v147 = vsub.s32 0, %v146
    %v148 = vrot.slane %v40, %v147
    %v149 = vlaneseq
    %v150 = vshrl.u32 %v149, 7
    %v151 = vsub.s32 1, %v150
    %v152 = vrot.slane %v40, %v151
    %v167 = vunpack.c.l.b16 %v28
    %v168 = vunpack.c.h.b16 %v28
    %v169 = vunpack.c.l.b16 %v29
    %v170 = vunpack.c.h.b16 %v29
    %v171 = vunpack.c.l.b16 %v30
    %v172 = vunpack.c.h.b16 %v30
    %v173 = vunpack.c.l.b16 %v31
    %v174 = vunpack.c.h.b16 %v31
    %v175 = vunpack.c.l.b16 %v32
    %v176 = vunpack.c.h.b16 %v32
    %v177 = vunpack.c.l.b16 %v33
    %v178 = vunpack.c.h.b16 %v33
    %v179 = vunpack.c.l.b16 %v34
    %v180 = vunpack.c.h.b16 %v34
    %v181 = vunpack.c.l.b16 %v35
    %v182 = vunpack.c.h.b16 %v35
    %v183 = vunpack.c.l.b16 %v36
    %v184 = vunpack.c.h.b16 %v36
    %v185 = vunpack.c.l.b16 %v37
    %v186 = vunpack.c.h.b16 %v37
    %v187 = vunpack.c.l.b16 %v38
    %v188 = vunpack.c.h.b16 %v38
    %v189 = vunpack.c.l.b16 %v39
    %v190 = vunpack.c.h.b16 %v39
    %v191 = vpack.c.b16 %v169, %v167
    %v192 = vpack.c.b16 %v170, %v168
    %v193 = vpack.c.b16 %v173, %v171
    %v194 = vpack.c.b16 %v174, %v172
    %v195 = vpack.c.b16 %v177, %v175
    %v196 = vpack.c.b16 %v178, %v176
    %v197 = vpack.c.b16 %v181, %v179
    %v198 = vpack.c.b16 %v182, %v180
    %v199 = vpack.c.b16 %v185, %v183
    %v200 = vpack.c.b16 %v186, %v184
    %v201 = vpack.c.b16 %v189, %v187
    %v202 = vpack.c.b16 %v190, %v188
    %vm215 = vcmask 785408
    %v217 = vsel %vm215, %v142, 0
    %v220 = vsel %vm215, %v143, 0
    %222 = vmatprep.subr.bf16.mxu0 %v192
    %223 = vmatpush1.bf16.msra.mxu0 %v191
    %224 = vmatprep.subr.bf16.mxu0 %v194
    %225 = vmatpush1.bf16.msra.mxu0 %v193
    %226 = vmatprep.subr.bf16.mxu0 %v196
    %227 = vmatpush1.bf16.msra.mxu0 %v195
    %228 = vmatprep.subr.bf16.mxu0 %v198
    %229 = vmatpush1.bf16.msra.mxu0 %v197
    %230 = vmatprep.subr.bf16.mxu0 %v200
    %231 = vmatpush1.bf16.msra.mxu0 %v199
    %232 = vmatprep.subr.bf16.mxu0 %v202
    %233 = vmatpush1.bf16.msra.mxu0 %v201
    %234 = vmatprep.subr.bf16.mxu0 0
    %235 = vmatpush1.bf16.msra.mxu0 0
    %236 = vmatprep.subr.bf16.mxu0 0
    %237 = vmatpush1.bf16.msra.mxu0 0
    %238 = vmatprep.subr.bf16.mxu0 0
    %239 = vmatpush1.bf16.msra.mxu0 0
    %240 = vmatprep.subr.bf16.mxu0 0
    %241 = vmatpush1.bf16.msra.mxu0 0
    %242 = vmatprep.subr.bf16.mxu0 0
    %243 = vmatpush1.bf16.msra.mxu0 0
    %244 = vmatprep.subr.bf16.mxu0 0
    %245 = vmatpush1.bf16.msra.mxu0 0
    %246 = vmatprep.subr.bf16.mxu0 0
    %247 = vmatpush1.bf16.msra.mxu0 0
    %248 = vmatprep.subr.bf16.mxu0 0
    %249 = vmatpush1.bf16.msra.mxu0 0
    %250 = vmatprep.subr.bf16.mxu0 0
    %251 = vmatpush1.bf16.msra.mxu0 0
    %252 = vmatprep.subr.bf16.mxu0 0
    %253 = vmatpush1.bf16.msra.mxu0 0
    %254 = vmatprep.mubr.bf16.mxu0 0
    %255 = vmatmul.mubr.bf16.gmra.mrb[0].mxu0 %v217
    %v256 = vpop.f32.mrb[0].mxu0
    %v257 = vadd.f32 %v148, %v256
    %v258 = vpop.f32.mrb[0].mxu0
    %v259 = vadd.f32 %v152, %v258
    %v260 = vpop.f32.mrb[0].mxu0
    %v261 = vadd.f32 %v148, %v260
    %v262 = vpop.f32.mrb[0].mxu0
    %v263 = vadd.f32 %v152, %v262
    %264 = vmatprep.mubr.bf16.mxu0 0
    %265 = vmatmul.mubr.bf16.gmra.mrb[0].mxu0 %v220
    %v266 = vpop.f32.mrb[0].mxu0
    %v267 = vadd.f32 %v148, %v266
    %v268 = vpop.f32.mrb[0].mxu0
    %v269 = vadd.f32 %v152, %v268
    %v270 = vpop.f32.mrb[0].mxu0
    %v271 = vadd.f32 %v148, %v270
    %v272 = vpop.f32.mrb[0].mxu0
    %v273 = vadd.f32 %v152, %v272
    %274 = vdwg.mxu0
    %v275 = vmax.f32 %v257, 0.0
    %v276 = vmax.f32 %v259, 0.0
    %v277 = vmax.f32 %v261, 0.0
    %v278 = vmax.f32 %v263, 0.0
    %v279 = vmax.f32 %v267, 0.0
    %v280 = vmax.f32 %v269, 0.0
    %v281 = vmax.f32 %v271, 0.0
    %v282 = vmax.f32 %v273, 0.0
    %vm287 = vcmask 1040384
    %v288 = vrot.slane %v275, 7
    %v289 = vrot.slane %v276, 7
    %v290 = vrot.slane %v277, 7
    %v291 = vsel %vm287, %v288, %v290
    %v292 = vrot.slane %v278, 7
    %v293 = vsel %vm287, %v289, %v292
    %vm302 = vcmask 1042432
    %v303 = vrot.slane %v277, 5
    %v304 = vrot.slane %v279, 5
    %v305 = vsel %vm302, %v303, %v304
    %v306 = vrot.slane %v278, 5
    %v307 = vrot.slane %v280, 5
    %v308 = vsel %vm302, %v306, %v307
    %v309 = vrot.slane %v281, 5
    %v310 = vsel %vm302, %v304, %v309
    %v311 = vrot.slane %v282, 5
    %v312 = vsel %vm302, %v307, %v311
    %v317 = vsel %vm287, 0.0, %v288
    %v318 = vsel %vm287, 0.0, %v289
    %vm319 = vcmask 1046528
    %v320 = vsel %vm319, %v291, 0.0
    %v321 = vsel %vm319, %v293, 0.0
    %v322 = vsel %vm287, 0.0, %v305
    %v323 = vsel %vm287, 0.0, %v308
    %v324 = vsel %vm319, %v310, 0.0
    %v325 = vsel %vm319, %v312, 0.0
    %v334 = vrot.slane %v317, 1
    %v335 = vrot.slane %v320, 1
    %v336 = vsel %vm319, %v334, %v335
    %v337 = vrot.slane %v318, 1
    %v338 = vrot.slane %v321, 1
    %v339 = vsel %vm319, %v337, %v338
    %v340 = vrot.slane %v322, 1
    %v341 = vsel %vm319, %v335, %v340
    %v342 = vrot.slane %v323, 1
    %v343 = vsel %vm319, %v338, %v342
    %v344 = vrot.slane %v324, 1
    %v345 = vsel %vm319, %v340, %v344
    %v346 = vrot.slane %v325, 1
    %v347 = vsel %vm319, %v342, %v346
    %vm356 = vcmask 1045504
    %v357 = vrot.slane %v317, 2
    %v358 = vrot.slane %v320, 2
    %v359 = vsel %vm356, %v357, %v358
    %v360 = vrot.slane %v318, 2
    %v361 = vrot.slane %v321, 2
    %v362 = vsel %vm356, %v360, %v361
    %v363 = vrot.slane %v322, 2
    %v364 = vsel %vm356, %v358, %v363
    %v365 = vrot.slane %v323, 2
    %v366 = vsel %vm356, %v361, %v365
    %v367 = vrot.slane %v324, 2
    %v368 = vsel %vm356, %v363, %v367
    %v369 = vrot.slane %v325, 2
    %v370 = vsel %vm356, %v365, %v369
    %v379 = vpack.c.bf16 %v320, %v317
    %v380 = vpack.c.bf16 %v321, %v318
    %v381 = vpack.c.bf16 %v341, %v336
    %v382 = vpack.c.bf16 %v343, %v339
    %v383 = vpack.c.bf16 %v364, %v359
    %v384 = vpack.c.bf16 %v366, %v362
    %v385 = vpack.c.bf16 %v324, %v322
    %v386 = vpack.c.bf16 %v325, %v323
    %v387 = vpack.c.bf16 %v344, %v345
    %v388 = vpack.c.bf16 %v346, %v347
    %v389 = vpack.c.bf16 %v367, %v368
    %v390 = vpack.c.bf16 %v369, %v370
    %v392 = vlaneseq
    %v393 = vshrl.u32 %v392, 7
    %v394 = vsub.s32 0, %v393
    %v395 = vrot.slane %v137, %v394
    %v396 = vlaneseq
    %v397 = vshrl.u32 %v396, 7
    %v398 = vsub.s32 1, %v397
    %v399 = vrot.slane %v137, %v398
    %v498 = vunpack.c.l.b16 %v41
    %v499 = vunpack.c.h.b16 %v41
    %v500 = vunpack.c.l.b16 %v42
    %v501 = vunpack.c.h.b16 %v42
    %v502 = vunpack.c.l.b16 %v43
    %v503 = vunpack.c.h.b16 %v43
    %v504 = vunpack.c.l.b16 %v44
    %v505 = vunpack.c.h.b16 %v44
    %v506 = vunpack.c.l.b16 %v45
    %v507 = vunpack.c.h.b16 %v45
    %v508 = vunpack.c.l.b16 %v46
    %v509 = vunpack.c.h.b16 %v46
    %v510 = vunpack.c.l.b16 %v47
    %v511 = vunpack.c.h.b16 %v47
    %v512 = vunpack.c.l.b16 %v48
    %v513 = vunpack.c.h.b16 %v48
    %v514 = vunpack.c.l.b16 %v49
    %v515 = vunpack.c.h.b16 %v49
    %v516 = vunpack.c.l.b16 %v50
    %v517 = vunpack.c.h.b16 %v50
    %v518 = vunpack.c.l.b16 %v51
    %v519 = vunpack.c.h.b16 %v51
    %v520 = vunpack.c.l.b16 %v52
    %v521 = vunpack.c.h.b16 %v52
    %v522 = vunpack.c.l.b16 %v53
    %v523 = vunpack.c.h.b16 %v53
    %v524 = vunpack.c.l.b16 %v54
    %v525 = vunpack.c.h.b16 %v54
    %v526 = vunpack.c.l.b16 %v55
    %v527 = vunpack.c.h.b16 %v55
    %v528 = vunpack.c.l.b16 %v56
    %v529 = vunpack.c.h.b16 %v56
    %v530 = vunpack.c.l.b16 %v57
    %v531 = vunpack.c.h.b16 %v57
    %v532 = vunpack.c.l.b16 %v58
    %v533 = vunpack.c.h.b16 %v58
    %v534 = vunpack.c.l.b16 %v59
    %v535 = vunpack.c.h.b16 %v59
    %v536 = vunpack.c.l.b16 %v60
    %v537 = vunpack.c.h.b16 %v60
    %v538 = vunpack.c.l.b16 %v61
    %v539 = vunpack.c.h.b16 %v61
    %v540 = vunpack.c.l.b16 %v62
    %v541 = vunpack.c.h.b16 %v62
    %v542 = vunpack.c.l.b16 %v63
    %v543 = vunpack.c.h.b16 %v63
    %v544 = vunpack.c.l.b16 %v64
    %v545 = vunpack.c.h.b16 %v64
    %v546 = vunpack.c.l.b16 %v65
    %v547 = vunpack.c.h.b16 %v65
    %v548 = vunpack.c.l.b16 %v66
    %v549 = vunpack.c.h.b16 %v66
    %v550 = vunpack.c.l.b16 %v67
    %v551 = vunpack.c.h.b16 %v67
    %v552 = vunpack.c.l.b16 %v68
    %v553 = vunpack.c.h.b16 %v68
    %v554 = vunpack.c.l.b16 %v69
    %v555 = vunpack.c.h.b16 %v69
    %v556 = vunpack.c.l.b16 %v70
    %v557 = vunpack.c.h.b16 %v70
    %v558 = vunpack.c.l.b16 %v71
    %v559 = vunpack.c.h.b16 %v71
    %v560 = vunpack.c.l.b16 %v72
    %v561 = vunpack.c.h.b16 %v72
    %v562 = vunpack.c.l.b16 %v73
    %v563 = vunpack.c.h.b16 %v73
    %v564 = vunpack.c.l.b16 %v74
    %v565 = vunpack.c.h.b16 %v74
    %v566 = vunpack.c.l.b16 %v75
    %v567 = vunpack.c.h.b16 %v75
    %v568 = vunpack.c.l.b16 %v76
    %v569 = vunpack.c.h.b16 %v76
    %v570 = vunpack.c.l.b16 %v77
    %v571 = vunpack.c.h.b16 %v77
    %v572 = vunpack.c.l.b16 %v78
    %v573 = vunpack.c.h.b16 %v78
    %v574 = vunpack.c.l.b16 %v79
    %v575 = vunpack.c.h.b16 %v79
    %v576 = vunpack.c.l.b16 %v80
    %v577 = vunpack.c.h.b16 %v80
    %v578 = vunpack.c.l.b16 %v81
    %v579 = vunpack.c.h.b16 %v81
    %v580 = vunpack.c.l.b16 %v82
    %v581 = vunpack.c.h.b16 %v82
    %v582 = vunpack.c.l.b16 %v83
    %v583 = vunpack.c.h.b16 %v83
    %v584 = vunpack.c.l.b16 %v84
    %v585 = vunpack.c.h.b16 %v84
    %v586 = vunpack.c.l.b16 %v85
    %v587 = vunpack.c.h.b16 %v85
    %v588 = vunpack.c.l.b16 %v86
    %v589 = vunpack.c.h.b16 %v86
    %v590 = vunpack.c.l.b16 %v87
    %v591 = vunpack.c.h.b16 %v87
    %v592 = vunpack.c.l.b16 %v88
    %v593 = vunpack.c.h.b16 %v88
    %v594 = vunpack.c.l.b16 %v89
    %v595 = vunpack.c.h.b16 %v89
    %v596 = vunpack.c.l.b16 %v90
    %v597 = vunpack.c.h.b16 %v90
    %v598 = vunpack.c.l.b16 %v91
    %v599 = vunpack.c.h.b16 %v91
    %v600 = vunpack.c.l.b16 %v92
    %v601 = vunpack.c.h.b16 %v92
    %v602 = vunpack.c.l.b16 %v93
    %v603 = vunpack.c.h.b16 %v93
    %v604 = vunpack.c.l.b16 %v94
    %v605 = vunpack.c.h.b16 %v94
    %v606 = vunpack.c.l.b16 %v95
    %v607 = vunpack.c.h.b16 %v95
    %v608 = vunpack.c.l.b16 %v96
    %v609 = vunpack.c.h.b16 %v96
    %v610 = vunpack.c.l.b16 %v97
    %v611 = vunpack.c.h.b16 %v97
    %v612 = vunpack.c.l.b16 %v98
    %v613 = vunpack.c.h.b16 %v98
    %v614 = vunpack.c.l.b16 %v99
    %v615 = vunpack.c.h.b16 %v99
    %v616 = vunpack.c.l.b16 %v100
    %v617 = vunpack.c.h.b16 %v100
    %v618 = vunpack.c.l.b16 %v101
    %v619 = vunpack.c.h.b16 %v101
    %v620 = vunpack.c.l.b16 %v102
    %v621 = vunpack.c.h.b16 %v102
    %v622 = vunpack.c.l.b16 %v103
    %v623 = vunpack.c.h.b16 %v103
    %v624 = vunpack.c.l.b16 %v104
    %v625 = vunpack.c.h.b16 %v104
    %v626 = vunpack.c.l.b16 %v105
    %v627 = vunpack.c.h.b16 %v105
    %v628 = vunpack.c.l.b16 %v106
    %v629 = vunpack.c.h.b16 %v106
    %v630 = vunpack.c.l.b16 %v107
    %v631 = vunpack.c.h.b16 %v107
    %v632 = vunpack.c.l.b16 %v108
    %v633 = vunpack.c.h.b16 %v108
    %v634 = vunpack.c.l.b16 %v109
    %v635 = vunpack.c.h.b16 %v109
    %v636 = vunpack.c.l.b16 %v110
    %v637 = vunpack.c.h.b16 %v110
    %v638 = vunpack.c.l.b16 %v111
    %v639 = vunpack.c.h.b16 %v111
    %v640 = vunpack.c.l.b16 %v112
    %v641 = vunpack.c.h.b16 %v112
    %v642 = vunpack.c.l.b16 %v113
    %v643 = vunpack.c.h.b16 %v113
    %v644 = vunpack.c.l.b16 %v114
    %v645 = vunpack.c.h.b16 %v114
    %v646 = vunpack.c.l.b16 %v115
    %v647 = vunpack.c.h.b16 %v115
    %v648 = vunpack.c.l.b16 %v116
    %v649 = vunpack.c.h.b16 %v116
    %v650 = vunpack.c.l.b16 %v117
    %v651 = vunpack.c.h.b16 %v117
    %v652 = vunpack.c.l.b16 %v118
    %v653 = vunpack.c.h.b16 %v118
    %v654 = vunpack.c.l.b16 %v119
    %v655 = vunpack.c.h.b16 %v119
    %v656 = vunpack.c.l.b16 %v120
    %v657 = vunpack.c.h.b16 %v120
    %v658 = vunpack.c.l.b16 %v121
    %v659 = vunpack.c.h.b16 %v121
    %v660 = vunpack.c.l.b16 %v122
    %v661 = vunpack.c.h.b16 %v122
    %v662 = vunpack.c.l.b16 %v123
    %v663 = vunpack.c.h.b16 %v123
    %v664 = vunpack.c.l.b16 %v124
    %v665 = vunpack.c.h.b16 %v124
    %v666 = vunpack.c.l.b16 %v125
    %v667 = vunpack.c.h.b16 %v125
    %v668 = vunpack.c.l.b16 %v126
    %v669 = vunpack.c.h.b16 %v126
    %v670 = vunpack.c.l.b16 %v127
    %v671 = vunpack.c.h.b16 %v127
    %v672 = vunpack.c.l.b16 %v128
    %v673 = vunpack.c.h.b16 %v128
    %v674 = vunpack.c.l.b16 %v129
    %v675 = vunpack.c.h.b16 %v129
    %v676 = vunpack.c.l.b16 %v130
    %v677 = vunpack.c.h.b16 %v130
    %v678 = vunpack.c.l.b16 %v131
    %v679 = vunpack.c.h.b16 %v131
    %v680 = vunpack.c.l.b16 %v132
    %v681 = vunpack.c.h.b16 %v132
    %v682 = vunpack.c.l.b16 %v133
    %v683 = vunpack.c.h.b16 %v133
    %v684 = vunpack.c.l.b16 %v134
    %v685 = vunpack.c.h.b16 %v134
    %v686 = vunpack.c.l.b16 %v135
    %v687 = vunpack.c.h.b16 %v135
    %v688 = vunpack.c.l.b16 %v136
    %v689 = vunpack.c.h.b16 %v136
    %v690 = vpack.c.b16 %v500, %v498
    %v691 = vpack.c.b16 %v501, %v499
    %v692 = vpack.c.b16 %v504, %v502
    %v693 = vpack.c.b16 %v505, %v503
    %v694 = vpack.c.b16 %v508, %v506
    %v695 = vpack.c.b16 %v509, %v507
    %v696 = vpack.c.b16 %v512, %v510
    %v697 = vpack.c.b16 %v513, %v511
    %v698 = vpack.c.b16 %v516, %v514
    %v699 = vpack.c.b16 %v517, %v515
    %v700 = vpack.c.b16 %v520, %v518
    %v701 = vpack.c.b16 %v521, %v519
    %v702 = vpack.c.b16 %v524, %v522
    %v703 = vpack.c.b16 %v525, %v523
    %v704 = vpack.c.b16 %v528, %v526
    %v705 = vpack.c.b16 %v529, %v527
    %v706 = vpack.c.b16 %v532, %v530
    %v707 = vpack.c.b16 %v533, %v531
    %v708 = vpack.c.b16 %v536, %v534
    %v709 = vpack.c.b16 %v537, %v535
    %v710 = vpack.c.b16 %v540, %v538
    %v711 = vpack.c.b16 %v541, %v539
    %v712 = vpack.c.b16 %v544, %v542
    %v713 = vpack.c.b16 %v545, %v543
    %v714 = vpack.c.b16 %v548, %v546
    %v715 = vpack.c.b16 %v549, %v547
    %v716 = vpack.c.b16 %v552, %v550
    %v717 = vpack.c.b16 %v553, %v551
    %v718 = vpack.c.b16 %v556, %v554
    %v719 = vpack.c.b16 %v557, %v555
    %v720 = vpack.c.b16 %v560, %v558
    %v721 = vpack.c.b16 %v561, %v559
    %v722 = vpack.c.b16 %v564, %v562
    %v723 = vpack.c.b16 %v565, %v563
    %v724 = vpack.c.b16 %v568, %v566
    %v725 = vpack.c.b16 %v569, %v567
    %v726 = vpack.c.b16 %v572, %v570
    %v727 = vpack.c.b16 %v573, %v571
    %v728 = vpack.c.b16 %v576, %v574
    %v729 = vpack.c.b16 %v577, %v575
    %v730 = vpack.c.b16 %v580, %v578
    %v731 = vpack.c.b16 %v581, %v579
    %v732 = vpack.c.b16 %v584, %v582
    %v733 = vpack.c.b16 %v585, %v583
    %v734 = vpack.c.b16 %v588, %v586
    %v735 = vpack.c.b16 %v589, %v587
    %v736 = vpack.c.b16 %v592, %v590
    %v737 = vpack.c.b16 %v593, %v591
    %v738 = vpack.c.b16 %v596, %v594
    %v739 = vpack.c.b16 %v597, %v595
    %v740 = vpack.c.b16 %v600, %v598
    %v741 = vpack.c.b16 %v601, %v599
    %v742 = vpack.c.b16 %v604, %v602
    %v743 = vpack.c.b16 %v605, %v603
    %v744 = vpack.c.b16 %v608, %v606
    %v745 = vpack.c.b16 %v609, %v607
    %v746 = vpack.c.b16 %v612, %v610
    %v747 = vpack.c.b16 %v613, %v611
    %v748 = vpack.c.b16 %v616, %v614
    %v749 = vpack.c.b16 %v617, %v615
    %v750 = vpack.c.b16 %v620, %v618
    %v751 = vpack.c.b16 %v621, %v619
    %v752 = vpack.c.b16 %v624, %v622
    %v753 = vpack.c.b16 %v625, %v623
    %v754 = vpack.c.b16 %v628, %v626
    %v755 = vpack.c.b16 %v629, %v627
    %v756 = vpack.c.b16 %v632, %v630
    %v757 = vpack.c.b16 %v633, %v631
    %v758 = vpack.c.b16 %v636, %v634
    %v759 = vpack.c.b16 %v637, %v635
    %v760 = vpack.c.b16 %v640, %v638
    %v761 = vpack.c.b16 %v641, %v639
    %v762 = vpack.c.b16 %v644, %v642
    %v763 = vpack.c.b16 %v645, %v643
    %v764 = vpack.c.b16 %v648, %v646
    %v765 = vpack.c.b16 %v649, %v647
    %v766 = vpack.c.b16 %v652, %v650
    %v767 = vpack.c.b16 %v653, %v651
    %v768 = vpack.c.b16 %v656, %v654
    %v769 = vpack.c.b16 %v657, %v655
    %v770 = vpack.c.b16 %v660, %v658
    %v771 = vpack.c.b16 %v661, %v659
    %v772 = vpack.c.b16 %v664, %v662
    %v773 = vpack.c.b16 %v665, %v663
    %v774 = vpack.c.b16 %v668, %v666
    %v775 = vpack.c.b16 %v669, %v667
    %v776 = vpack.c.b16 %v672, %v670
    %v777 = vpack.c.b16 %v673, %v671
    %v778 = vpack.c.b16 %v676, %v674
    %v779 = vpack.c.b16 %v677, %v675
    %v780 = vpack.c.b16 %v680, %v678
    %v781 = vpack.c.b16 %v681, %v679
    %v782 = vpack.c.b16 %v684, %v682
    %v783 = vpack.c.b16 %v685, %v683
    %v784 = vpack.c.b16 %v688, %v686
    %v785 = vpack.c.b16 %v689, %v687
    %882 = vmatprep.subr.bf16.mxu0 %v691
    %883 = vmatpush1.bf16.msra.mxu0 %v690
    %884 = vmatprep.subr.bf16.mxu0 %v693
    %885 = vmatpush1.bf16.msra.mxu0 %v692
    %886 = vmatprep.subr.bf16.mxu0 %v695
    %887 = vmatpush1.bf16.msra.mxu0 %v694
    %888 = vmatprep.subr.bf16.mxu0 %v697
    %889 = vmatpush1.bf16.msra.mxu0 %v696
    %890 = vmatprep.subr.bf16.mxu0 %v699
    %891 = vmatpush1.bf16.msra.mxu0 %v698
    %892 = vmatprep.subr.bf16.mxu0 %v701
    %893 = vmatpush1.bf16.msra.mxu0 %v700
    %894 = vmatprep.subr.bf16.mxu0 %v703
    %895 = vmatpush1.bf16.msra.mxu0 %v702
    %896 = vmatprep.subr.bf16.mxu0 %v705
    %897 = vmatpush1.bf16.msra.mxu0 %v704
    %898 = vmatprep.subr.bf16.mxu0 %v707
    %899 = vmatpush1.bf16.msra.mxu0 %v706
    %900 = vmatprep.subr.bf16.mxu0 %v709
    %901 = vmatpush1.bf16.msra.mxu0 %v708
    %902 = vmatprep.subr.bf16.mxu0 %v711
    %903 = vmatpush1.bf16.msra.mxu0 %v710
    %904 = vmatprep.subr.bf16.mxu0 %v713
    %905 = vmatpush1.bf16.msra.mxu0 %v712
    %906 = vmatprep.subr.bf16.mxu0 %v715
    %907 = vmatpush1.bf16.msra.mxu0 %v714
    %908 = vmatprep.subr.bf16.mxu0 %v717
    %909 = vmatpush1.bf16.msra.mxu0 %v716
    %910 = vmatprep.subr.bf16.mxu0 %v719
    %911 = vmatpush1.bf16.msra.mxu0 %v718
    %912 = vmatprep.subr.bf16.mxu0 %v721
    %913 = vmatpush1.bf16.msra.mxu0 %v720
    %914 = vmatprep.mubr.bf16.mxu0 %v380
    %915 = vmatmul.mubr.bf16.gmra.mrb[0].mxu0 %v379
    %v916 = vpop.f32.mrb[0].mxu0
    %v917 = vadd.f32 %v395, %v916
    %v918 = vpop.f32.mrb[0].mxu0
    %v919 = vadd.f32 %v399, %v918
    %v920 = vpop.f32.mrb[0].mxu0
    %v921 = vadd.f32 %v395, %v920
    %v922 = vpop.f32.mrb[0].mxu0
    %v923 = vadd.f32 %v399, %v922
    %924 = vmatprep.mubr.bf16.mxu0 %v386
    %925 = vmatmul.mubr.bf16.gmra.mrb[0].mxu0 %v385
    %v926 = vpop.f32.mrb[0].mxu0
    %v927 = vadd.f32 %v395, %v926
    %v928 = vpop.f32.mrb[0].mxu0
    %v929 = vadd.f32 %v399, %v928
    %v930 = vpop.f32.mrb[0].mxu0
    %v931 = vadd.f32 %v395, %v930
    %v932 = vpop.f32.mrb[0].mxu0
    %v933 = vadd.f32 %v399, %v932
    %934 = vdwg.mxu0
    %935 = vmatprep.subr.bf16.mxu0 %v723
    %936 = vmatpush1.bf16.msra.mxu0 %v722
    %937 = vmatprep.subr.bf16.mxu0 %v725
    %938 = vmatpush1.bf16.msra.mxu0 %v724
    %939 = vmatprep.subr.bf16.mxu0 %v727
    %940 = vmatpush1.bf16.msra.mxu0 %v726
    %941 = vmatprep.subr.bf16.mxu0 %v729
    %942 = vmatpush1.bf16.msra.mxu0 %v728
    %943 = vmatprep.subr.bf16.mxu0 %v731
    %944 = vmatpush1.bf16.msra.mxu0 %v730
    %945 = vmatprep.subr.bf16.mxu0 %v733
    %946 = vmatpush1.bf16.msra.mxu0 %v732
    %947 = vmatprep.subr.bf16.mxu0 %v735
    %948 = vmatpush1.bf16.msra.mxu0 %v734
    %949 = vmatprep.subr.bf16.mxu0 %v737
    %950 = vmatpush1.bf16.msra.mxu0 %v736
    %951 = vmatprep.subr.bf16.mxu0 %v739
    %952 = vmatpush1.bf16.msra.mxu0 %v738
    %953 = vmatprep.subr.bf16.mxu0 %v741
    %954 = vmatpush1.bf16.msra.mxu0 %v740
    %955 = vmatprep.subr.bf16.mxu0 %v743
    %956 = vmatpush1.bf16.msra.mxu0 %v742
    %957 = vmatprep.subr.bf16.mxu0 %v745
    %958 = vmatpush1.bf16.msra.mxu0 %v744
    %959 = vmatprep.subr.bf16.mxu0 %v747
    %960 = vmatpush1.bf16.msra.mxu0 %v746
    %961 = vmatprep.subr.bf16.mxu0 %v749
    %962 = vmatpush1.bf16.msra.mxu0 %v748
    %963 = vmatprep.subr.bf16.mxu0 %v751
    %964 = vmatpush1.bf16.msra.mxu0 %v750
    %965 = vmatprep.subr.bf16.mxu0 %v753
    %966 = vmatpush1.bf16.msra.mxu0 %v752
    %967 = vmatprep.mubr.bf16.mxu0 %v382
    %968 = vmatmul.mubr.bf16.gmra.mrb[0].mxu0 %v381
    %v969 = vpop.f32.mrb[0].mxu0
    %v970 = vadd.f32 %v917, %v969
    %v971 = vpop.f32.mrb[0].mxu0
    %v972 = vadd.f32 %v919, %v971
    %v973 = vpop.f32.mrb[0].mxu0
    %v974 = vadd.f32 %v921, %v973
    %v975 = vpop.f32.mrb[0].mxu0
    %v976 = vadd.f32 %v923, %v975
    %977 = vmatprep.mubr.bf16.mxu0 %v388
    %978 = vmatmul.mubr.bf16.gmra.mrb[0].mxu0 %v387
    %v979 = vpop.f32.mrb[0].mxu0
    %v980 = vadd.f32 %v927, %v979
    %v981 = vpop.f32.mrb[0].mxu0
    %v982 = vadd.f32 %v929, %v981
    %v983 = vpop.f32.mrb[0].mxu0
    %v984 = vadd.f32 %v931, %v983
    %v985 = vpop.f32.mrb[0].mxu0
    %v986 = vadd.f32 %v933, %v985
    %987 = vdwg.mxu0
    %988 = vmatprep.subr.bf16.mxu0 %v755
    %989 = vmatpush1.bf16.msra.mxu0 %v754
    %990 = vmatprep.subr.bf16.mxu0 %v757
    %991 = vmatpush1.bf16.msra.mxu0 %v756
    %992 = vmatprep.subr.bf16.mxu0 %v759
    %993 = vmatpush1.bf16.msra.mxu0 %v758
    %994 = vmatprep.subr.bf16.mxu0 %v761
    %995 = vmatpush1.bf16.msra.mxu0 %v760
    %996 = vmatprep.subr.bf16.mxu0 %v763
    %997 = vmatpush1.bf16.msra.mxu0 %v762
    %998 = vmatprep.subr.bf16.mxu0 %v765
    %999 = vmatpush1.bf16.msra.mxu0 %v764
    %1000 = vmatprep.subr.bf16.mxu0 %v767
    %1001 = vmatpush1.bf16.msra.mxu0 %v766
    %1002 = vmatprep.subr.bf16.mxu0 %v769
    %1003 = vmatpush1.bf16.msra.mxu0 %v768
    %1004 = vmatprep.subr.bf16.mxu0 %v771
    %1005 = vmatpush1.bf16.msra.mxu0 %v770
    %1006 = vmatprep.subr.bf16.mxu0 %v773
    %1007 = vmatpush1.bf16.msra.mxu0 %v772
    %1008 = vmatprep.subr.bf16.mxu0 %v775
    %1009 = vmatpush1.bf16.msra.mxu0 %v774
    %1010 = vmatprep.subr.bf16.mxu0 %v777
    %1011 = vmatpush1.bf16.msra.mxu0 %v776
    %1012 = vmatprep.subr.bf16.mxu0 %v779
    %1013 = vmatpush1.bf16.msra.mxu0 %v778
    %1014 = vmatprep.subr.bf16.mxu0 %v781
    %1015 = vmatpush1.bf16.msra.mxu0 %v780
    %1016 = vmatprep.subr.bf16.mxu0 %v783
    %1017 = vmatpush1.bf16.msra.mxu0 %v782
    %1018 = vmatprep.subr.bf16.mxu0 %v785
    %1019 = vmatpush1.bf16.msra.mxu0 %v784
    %1020 = vmatprep.mubr.bf16.mxu0 %v384
    %1021 = vmatmul.mubr.bf16.gmra.mrb[0].mxu0 %v383
    %v1022 = vpop.f32.mrb[0].mxu0
    %v1023 = vadd.f32 %v970, %v1022
    %v1024 = vpop.f32.mrb[0].mxu0
    %v1025 = vadd.f32 %v972, %v1024
    %v1026 = vpop.f32.mrb[0].mxu0
    %v1027 = vadd.f32 %v974, %v1026
    %v1028 = vpop.f32.mrb[0].mxu0
    %v1029 = vadd.f32 %v976, %v1028
    %1030 = vmatprep.mubr.bf16.mxu0 %v390
    %1031 = vmatmul.mubr.bf16.gmra.mrb[0].mxu0 %v389
    %v1032 = vpop.f32.mrb[0].mxu0
    %v1033 = vadd.f32 %v980, %v1032
    %v1034 = vpop.f32.mrb[0].mxu0
    %v1035 = vadd.f32 %v982, %v1034
    %v1036 = vpop.f32.mrb[0].mxu0
    %v1037 = vadd.f32 %v984, %v1036
    %v1038 = vpop.f32.mrb[0].mxu0
    %v1039 = vadd.f32 %v986, %v1038
    %1040 = vdwg.mxu0
    %v1045 = vrot.slane %v1033, 2
    %v1046 = vrot.slane %v1035, 2
    %v1047 = vrot.slane %v1037, 2
    %v1048 = vsel %vm356, %v1045, %v1047
    %v1049 = vrot.slane %v1039, 2
    %v1050 = vsel %vm356, %v1046, %v1049
    %v1057 = vsel %vm356, %v1027, %v1045
    %v1058 = vsel %vm356, %v1029, %v1046
    %v1059 = vmax.f32 %v1023, 0.0
    %v1060 = vmax.f32 %v1025, 0.0
    %v1061 = vmax.f32 %v1057, 0.0
    %v1062 = vmax.f32 %v1058, 0.0
    %v1063 = vmax.f32 %v1048, 0.0
    %v1064 = vmax.f32 %v1050, 0.0
    %v1065 = vmax.f32 %v1047, 0.0
    %v1066 = vmax.f32 %v1049, 0.0
    %v1071 = vrot.slane %v1059, 7
    %v1072 = vrot.slane %v1060, 7
    %v1073 = vrot.slane %v1061, 7
    %v1074 = vsel %vm287, %v1071, %v1073
    %v1075 = vrot.slane %v1062, 7
    %v1076 = vsel %vm287, %v1072, %v1075
    %v1085 = vrot.slane %v1061, 5
    %v1086 = vrot.slane %v1063, 5
    %v1087 = vsel %vm302, %v1085, %v1086
    %v1088 = vrot.slane %v1062, 5
    %v1089 = vrot.slane %v1064, 5
    %v1090 = vsel %vm302, %v1088, %v1089
    %v1091 = vrot.slane %v1065, 5
    %v1092 = vsel %vm302, %v1086, %v1091
    %v1093 = vrot.slane %v1066, 5
    %v1094 = vsel %vm302, %v1089, %v1093
    %v1099 = vsel %vm287, 0.0, %v1071
    %v1100 = vsel %vm287, 0.0, %v1072
    %v1101 = vsel %vm319, %v1074, 0.0
    %v1102 = vsel %vm319, %v1076, 0.0
    %v1103 = vsel %vm287, 0.0, %v1087
    %v1104 = vsel %vm287, 0.0, %v1090
    %v1105 = vsel %vm319, %v1092, 0.0
    %v1106 = vsel %vm319, %v1094, 0.0
    %v1115 = vrot.slane %v1099, 1
    %v1116 = vrot.slane %v1101, 1
    %v1117 = vsel %vm319, %v1115, %v1116
    %v1118 = vrot.slane %v1100, 1
    %v1119 = vrot.slane %v1102, 1
    %v1120 = vsel %vm319, %v1118, %v1119
    %v1121 = vrot.slane %v1103, 1
    %v1122 = vsel %vm319, %v1116, %v1121
    %v1123 = vrot.slane %v1104, 1
    %v1124 = vsel %vm319, %v1119, %v1123
    %v1125 = vrot.slane %v1105, 1
    %v1126 = vsel %vm319, %v1121, %v1125
    %v1127 = vrot.slane %v1106, 1
    %v1128 = vsel %vm319, %v1123, %v1127
    %v1137 = vrot.slane %v1099, 2
    %v1138 = vrot.slane %v1101, 2
    %v1139 = vsel %vm356, %v1137, %v1138
    %v1140 = vrot.slane %v1100, 2
    %v1141 = vrot.slane %v1102, 2
    %v1142 = vsel %vm356, %v1140, %v1141
    %v1143 = vrot.slane %v1103, 2
    %v1144 = vsel %vm356, %v1138, %v1143
    %v1145 = vrot.slane %v1104, 2
    %v1146 = vsel %vm356, %v1141, %v1145
    %v1147 = vrot.slane %v1105, 2
    %v1148 = vsel %vm356, %v1143, %v1147
    %v1149 = vrot.slane %v1106, 2
    %v1150 = vsel %vm356, %v1145, %v1149
    %v1159 = vpack.c.bf16 %v1101, %v1099
    %v1160 = vpack.c.bf16 %v1102, %v1100
    %v1161 = vpack.c.bf16 %v1122, %v1117
    %v1162 = vpack.c.bf16 %v1124, %v1120
    %v1163 = vpack.c.bf16 %v1144, %v1139
    %v1164 = vpack.c.bf16 %v1146, %v1142
    %v1165 = vpack.c.bf16 %v1105, %v1103
    %v1166 = vpack.c.bf16 %v1106, %v1104
    %v1167 = vpack.c.bf16 %v1125, %v1126
    %v1168 = vpack.c.bf16 %v1127, %v1128
    %v1169 = vpack.c.bf16 %v1147, %v1148
    %v1170 = vpack.c.bf16 %v1149, %v1150
    %1171 = vmatprep.subr.bf16.mxu0 %v691
    %1172 = vmatpush1.bf16.msra.mxu0 %v690
    %1173 = vmatprep.subr.bf16.mxu0 %v693
    %1174 = vmatpush1.bf16.msra.mxu0 %v692
    %1175 = vmatprep.subr.bf16.mxu0 %v695
    %1176 = vmatpush1.bf16.msra.mxu0 %v694
    %1177 = vmatprep.subr.bf16.mxu0 %v697
    %1178 = vmatpush1.bf16.msra.mxu0 %v696
    %1179 = vmatprep.subr.bf16.mxu0 %v699
    %1180 = vmatpush1.bf16.msra.mxu0 %v698
    %1181 = vmatprep.subr.bf16.mxu0 %v701
    %1182 = vmatpush1.bf16.msra.mxu0 %v700
    %1183 = vmatprep.subr.bf16.mxu0 %v703
    %1184 = vmatpush1.bf16.msra.mxu0 %v702
    %1185 = vmatprep.subr.bf16.mxu0 %v705
    %1186 = vmatpush1.bf16.msra.mxu0 %v704
    %1187 = vmatprep.subr.bf16.mxu0 %v707
    %1188 = vmatpush1.bf16.msra.mxu0 %v706
    %1189 = vmatprep.subr.bf16.mxu0 %v709
    %1190 = vmatpush1.bf16.msra.mxu0 %v708
    %1191 = vmatprep.subr.bf16.mxu0 %v711
    %1192 = vmatpush1.bf16.msra.mxu0 %v710
    %1193 = vmatprep.subr.bf16.mxu0 %v713
    %1194 = vmatpush1.bf16.msra.mxu0 %v712
    %1195 = vmatprep.subr.bf16.mxu0 %v715
    %1196 = vmatpush1.bf16.msra.mxu0 %v714
    %1197 = vmatprep.subr.bf16.mxu0 %v717
    %1198 = vmatpush1.bf16.msra.mxu0 %v716
    %1199 = vmatprep.subr.bf16.mxu0 %v719
    %1200 = vmatpush1.bf16.msra.mxu0 %v718
    %1201 = vmatprep.subr.bf16.mxu0 %v721
    %1202 = vmatpush1.bf16.msra.mxu0 %v720
    %1203 = vmatprep.mubr.bf16.mxu0 %v1160
    %1204 = vmatmul.mubr.bf16.gmra.mrb[0].mxu0 %v1159
    %v1205 = vpop.f32.mrb[0].mxu0
    %v1206 = vadd.f32 %v395, %v1205
    %v1207 = vpop.f32.mrb[0].mxu0
    %v1208 = vadd.f32 %v399, %v1207
    %v1209 = vpop.f32.mrb[0].mxu0
    %v1210 = vadd.f32 %v395, %v1209
    %v1211 = vpop.f32.mrb[0].mxu0
    %v1212 = vadd.f32 %v399, %v1211
    %1213 = vmatprep.mubr.bf16.mxu0 %v1166
    %1214 = vmatmul.mubr.bf16.gmra.mrb[0].mxu0 %v1165
    %v1215 = vpop.f32.mrb[0].mxu0
    %v1216 = vadd.f32 %v395, %v1215
    %v1217 = vpop.f32.mrb[0].mxu0
    %v1218 = vadd.f32 %v399, %v1217
    %v1219 = vpop.f32.mrb[0].mxu0
    %v1220 = vadd.f32 %v395, %v1219
    %v1221 = vpop.f32.mrb[0].mxu0
    %v1222 = vadd.f32 %v399, %v1221
    %1223 = vdwg.mxu0
    %1224 = vmatprep.subr.bf16.mxu0 %v723
    %1225 = vmatpush1.bf16.msra.mxu0 %v722
    %1226 = vmatprep.subr.bf16.mxu0 %v725
    %1227 = vmatpush1.bf16.msra.mxu0 %v724
    %1228 = vmatprep.subr.bf16.mxu0 %v727
    %1229 = vmatpush1.bf16.msra.mxu0 %v726
    %1230 = vmatprep.subr.bf16.mxu0 %v729
    %1231 = vmatpush1.bf16.msra.mxu0 %v728
    %1232 = vmatprep.subr.bf16.mxu0 %v731
    %1233 = vmatpush1.bf16.msra.mxu0 %v730
    %1234 = vmatprep.subr.bf16.mxu0 %v733
    %1235 = vmatpush1.bf16.msra.mxu0 %v732
    %1236 = vmatprep.subr.bf16.mxu0 %v735
    %1237 = vmatpush1.bf16.msra.mxu0 %v734
    %1238 = vmatprep.subr.bf16.mxu0 %v737
    %1239 = vmatpush1.bf16.msra.mxu0 %v736
    %1240 = vmatprep.subr.bf16.mxu0 %v739
    %1241 = vmatpush1.bf16.msra.mxu0 %v738
    %1242 = vmatprep.subr.bf16.mxu0 %v741
    %1243 = vmatpush1.bf16.msra.mxu0 %v740
    %1244 = vmatprep.subr.bf16.mxu0 %v743
    %1245 = vmatpush1.bf16.msra.mxu0 %v742
    %1246 = vmatprep.subr.bf16.mxu0 %v745
    %1247 = vmatpush1.bf16.msra.mxu0 %v744
    %1248 = vmatprep.subr.bf16.mxu0 %v747
    %1249 = vmatpush1.bf16.msra.mxu0 %v746
    %1250 = vmatprep.subr.bf16.mxu0 %v749
    %1251 = vmatpush1.bf16.msra.mxu0 %v748
    %1252 = vmatprep.subr.bf16.mxu0 %v751
    %1253 = vmatpush1.bf16.msra.mxu0 %v750
    %1254 = vmatprep.subr.bf16.mxu0 %v753
    %1255 = vmatpush1.bf16.msra.mxu0 %v752
    %1256 = vmatprep.mubr.bf16.mxu0 %v1162
    %1257 = vmatmul.mubr.bf16.gmra.mrb[0].mxu0 %v1161
    %v1258 = vpop.f32.mrb[0].mxu0
    %v1259 = vadd.f32 %v1206, %v1258
    %v1260 = vpop.f32.mrb[0].mxu0
    %v1261 = vadd.f32 %v1208, %v1260
    %v1262 = vpop.f32.mrb[0].mxu0
    %v1263 = vadd.f32 %v1210, %v1262
    %v1264 = vpop.f32.mrb[0].mxu0
    %v1265 = vadd.f32 %v1212, %v1264
    %1266 = vmatprep.mubr.bf16.mxu0 %v1168
    %1267 = vmatmul.mubr.bf16.gmra.mrb[0].mxu0 %v1167
    %v1268 = vpop.f32.mrb[0].mxu0
    %v1269 = vadd.f32 %v1216, %v1268
    %v1270 = vpop.f32.mrb[0].mxu0
    %v1271 = vadd.f32 %v1218, %v1270
    %v1272 = vpop.f32.mrb[0].mxu0
    %v1273 = vadd.f32 %v1220, %v1272
    %v1274 = vpop.f32.mrb[0].mxu0
    %v1275 = vadd.f32 %v1222, %v1274
    %1276 = vdwg.mxu0
    %1277 = vmatprep.subr.bf16.mxu0 %v755
    %1278 = vmatpush1.bf16.msra.mxu0 %v754
    %1279 = vmatprep.subr.bf16.mxu0 %v757
    %1280 = vmatpush1.bf16.msra.mxu0 %v756
    %1281 = vmatprep.subr.bf16.mxu0 %v759
    %1282 = vmatpush1.bf16.msra.mxu0 %v758
    %1283 = vmatprep.subr.bf16.mxu0 %v761
    %1284 = vmatpush1.bf16.msra.mxu0 %v760
    %1285 = vmatprep.subr.bf16.mxu0 %v763
    %1286 = vmatpush1.bf16.msra.mxu0 %v762
    %1287 = vmatprep.subr.bf16.mxu0 %v765
    %1288 = vmatpush1.bf16.msra.mxu0 %v764
    %1289 = vmatprep.subr.bf16.mxu0 %v767
    %1290 = vmatpush1.bf16.msra.mxu0 %v766
    %1291 = vmatprep.subr.bf16.mxu0 %v769
    %1292 = vmatpush1.bf16.msra.mxu0 %v768
    %1293 = vmatprep.subr.bf16.mxu0 %v771
    %1294 = vmatpush1.bf16.msra.mxu0 %v770
    %1295 = vmatprep.subr.bf16.mxu0 %v773
    %1296 = vmatpush1.bf16.msra.mxu0 %v772
    %1297 = vmatprep.subr.bf16.mxu0 %v775
    %1298 = vmatpush1.bf16.msra.mxu0 %v774
    %1299 = vmatprep.subr.bf16.mxu0 %v777
    %1300 = vmatpush1.bf16.msra.mxu0 %v776
    %1301 = vmatprep.subr.bf16.mxu0 %v779
    %1302 = vmatpush1.bf16.msra.mxu0 %v778
    %1303 = vmatprep.subr.bf16.mxu0 %v781
    %1304 = vmatpush1.bf16.msra.mxu0 %v780
    %1305 = vmatprep.subr.bf16.mxu0 %v783
    %1306 = vmatpush1.bf16.msra.mxu0 %v782
    %1307 = vmatprep.subr.bf16.mxu0 %v785
    %1308 = vmatpush1.bf16.msra.mxu0 %v784
    %1309 = vmatprep.mubr.bf16.mxu0 %v1164
    %1310 = vmatmul.mubr.bf16.gmra.mrb[0].mxu0 %v1163
    %v1311 = vpop.f32.mrb[0].mxu0
    %v1312 = vadd.f32 %v1259, %v1311
    %v1313 = vpop.f32.mrb[0].mxu0
    %v1314 = vadd.f32 %v1261, %v1313
    %v1315 = vpop.f32.mrb[0].mxu0
    %v1316 = vadd.f32 %v1263, %v1315
    %v1317 = vpop.f32.mrb[0].mxu0
    %v1318 = vadd.f32 %v1265, %v1317
    %1319 = vmatprep.mubr.bf16.mxu0 %v1170
    %1320 = vmatmul.mubr.bf16.gmra.mrb[0].mxu0 %v1169
    %v1321 = vpop.f32.mrb[0].mxu0
    %v1322 = vadd.f32 %v1269, %v1321
    %v1323 = vpop.f32.mrb[0].mxu0
    %v1324 = vadd.f32 %v1271, %v1323
    %v1325 = vpop.f32.mrb[0].mxu0
    %v1326 = vadd.f32 %v1273, %v1325
    %v1327 = vpop.f32.mrb[0].mxu0
    %v1328 = vadd.f32 %v1275, %v1327
    %1329 = vdwg.mxu0
    %v1334 = vrot.slane %v1322, 2
    %v1335 = vrot.slane %v1324, 2
    %v1336 = vrot.slane %v1326, 2
    %v1337 = vsel %vm356, %v1334, %v1336
    %v1338 = vrot.slane %v1328, 2
    %v1339 = vsel %vm356, %v1335, %v1338
    %v1346 = vsel %vm356, %v1316, %v1334
    %v1347 = vsel %vm356, %v1318, %v1335
    %v1348 = vadd.f32 %v1312, %v257
    %v1349 = vadd.f32 %v1314, %v259
    %v1350 = vadd.f32 %v1346, %v261
    %v1351 = vadd.f32 %v1347, %v263
    %v1352 = vadd.f32 %v1337, %v267
    %v1353 = vadd.f32 %v1339, %v269
    %v1354 = vadd.f32 %v1336, %v271
    %v1355 = vadd.f32 %v1338, %v273
    %v1358 = vrot.slane %v1348, 1
    %v1359 = vrot.slane %v1349, 1
    %v1362 = vmax.f32 %v1348, %v1358
    %v1363 = vmax.f32 %v1349, %v1359
    %v1364 = vrot.slane %v1348, 2
    %v1365 = vrot.slane %v1349, 2
    %v1368 = vmax.f32 %v1362, %v1364
    %v1369 = vmax.f32 %v1363, %v1365
    %v1372 = vrot.slane %v1350, 2
    %v1373 = vrot.slane %v1351, 2
    %v1376 = vmax.f32 %v1362, %v1372
    %v1377 = vmax.f32 %v1363, %v1373
    %v1378 = vrot.slane %v1350, 1
    %v1379 = vrot.slane %v1351, 1
    %v1382 = vmax.f32 %v1350, %v1378
    %v1383 = vmax.f32 %v1351, %v1379
    %v1384 = vmax.f32 %v1382, %v1372
    %v1385 = vmax.f32 %v1383, %v1373
    %v1388 = vrot.slane %v1352, 2
    %v1389 = vrot.slane %v1353, 2
    %v1392 = vmax.f32 %v1382, %v1388
    %v1393 = vmax.f32 %v1383, %v1389
    %v1394 = vrot.slane %v1352, 1
    %v1395 = vrot.slane %v1353, 1
    %v1398 = vmax.f32 %v1352, %v1394
    %v1399 = vmax.f32 %v1353, %v1395
    %v1400 = vmax.f32 %v1398, %v1388
    %v1401 = vmax.f32 %v1399, %v1389
    %v1404 = vrot.slane %v1354, 2
    %v1405 = vrot.slane %v1355, 2
    %v1408 = vmax.f32 %v1398, %v1404
    %v1409 = vmax.f32 %v1399, %v1405
    %v1410 = vrot.slane %v1354, 1
    %v1411 = vrot.slane %v1355, 1
    %v1414 = vmax.f32 %v1354, %v1410
    %v1415 = vmax.f32 %v1355, %v1411
    %v1416 = vmax.f32 %v1414, %v1404
    %v1417 = vmax.f32 %v1415, %v1405
    %v1420 = vrot.slane %v1368, 1
    %v1421 = vrot.slane %v1369, 1
    %v1424 = vrot.slane %v1368, 2
    %v1425 = vrot.slane %v1369, 2
    %v1430 = vrot.slane %v1376, 3
    %v1431 = vrot.slane %v1377, 3
    %v1436 = vrot.slane %v1384, 4
    %v1437 = vrot.slane %v1385, 4
    %v1440 = vrot.slane %v1384, 5
    %v1441 = vrot.slane %v1385, 5
    %v1446 = vrot.slane %v1400, 1
    %v1447 = vrot.slane %v1401, 1
    %v1450 = vrot.slane %v1400, 2
    %v1451 = vrot.slane %v1401, 2
    %v1454 = vrot.slane %v1400, 3
    %v1455 = vrot.slane %v1401, 3
    %v1460 = vrot.slane %v1408, 4
    %v1461 = vrot.slane %v1409, 4
    %v1466 = vrot.slane %v1416, 5
    %v1467 = vrot.slane %v1417, 5
    %v1470 = vsel %vm287, %v1368, %v1420
    %v1471 = vsel %vm287, %v1369, %v1421
    %vm1472 = vcmask 1041408
    %v1473 = vsel %vm1472, %v1470, %v1424
    %v1474 = vsel %vm1472, %v1471, %v1425
    %v1475 = vsel %vm302, %v1473, %v1430
    %v1476 = vsel %vm302, %v1474, %v1431
    %vm1477 = vcmask 1043456
    %v1478 = vsel %vm1477, %v1475, %v1436
    %v1479 = vsel %vm1477, %v1476, %v1437
    %vm1480 = vcmask 1044480
    %v1481 = vsel %vm1480, %v1478, %v1440
    %v1482 = vsel %vm1480, %v1479, %v1441
    %v1483 = vsel %vm356, %v1481, %v1392
    %v1484 = vsel %vm356, %v1482, %v1393
    %v1485 = vsel %vm319, %v1483, %v1446
    %v1486 = vsel %vm319, %v1484, %v1447
    %v1487 = vsel %vm287, %v1450, %v1454
    %v1488 = vsel %vm287, %v1451, %v1455
    %v1489 = vsel %vm1472, %v1487, %v1460
    %v1490 = vsel %vm1472, %v1488, %v1461
    %v1491 = vsel %vm302, %v1489, %v1466
    %v1492 = vsel %vm302, %v1490, %v1467
    %v1493 = vmax.f32 %v1485, 0.0
    %v1494 = vmax.f32 %v1486, 0.0
    %v1495 = vmax.f32 %v1491, 0.0
    %v1496 = vmax.f32 %v1492, 0.0
    %v1499 = vrot.slane %v1493, 7
    %v1500 = vrot.slane %v1494, 7
    %v1505 = vrot.slane %v1493, 5
    %v1506 = vrot.slane %v1495, 5
    %v1507 = vsel %vm302, %v1505, %v1506
    %v1508 = vrot.slane %v1494, 5
    %v1509 = vrot.slane %v1496, 5
    %v1510 = vsel %vm302, %v1508, %v1509
    %v1513 = vsel %vm287, 0.0, %v1499
    %v1514 = vsel %vm287, 0.0, %v1500
    %v1515 = vsel %vm319, %v1513, 0.0
    %v1516 = vsel %vm319, %v1514, 0.0
    %v1517 = vsel %vm287, 0.0, %v1507
    %v1518 = vsel %vm287, 0.0, %v1510
    %v1519 = vsel %vm319, %v1517, 0.0
    %v1520 = vsel %vm319, %v1518, 0.0
    %v1525 = vrot.slane %v1515, 1
    %v1526 = vrot.slane %v1519, 1
    %v1527 = vsel %vm319, %v1525, %v1526
    %v1528 = vrot.slane %v1516, 1
    %v1529 = vrot.slane %v1520, 1
    %v1530 = vsel %vm319, %v1528, %v1529
    %v1535 = vrot.slane %v1515, 2
    %v1536 = vrot.slane %v1519, 2
    %v1537 = vsel %vm356, %v1535, %v1536
    %v1538 = vrot.slane %v1516, 2
    %v1539 = vrot.slane %v1520, 2
    %v1540 = vsel %vm356, %v1538, %v1539
    %v1545 = vpack.c.bf16 %v1519, %v1515
    %v1546 = vpack.c.bf16 %v1520, %v1516
    %v1547 = vpack.c.bf16 %v1526, %v1527
    %v1548 = vpack.c.bf16 %v1529, %v1530
    %v1549 = vpack.c.bf16 %v1536, %v1537
    %v1550 = vpack.c.bf16 %v1539, %v1540
    %1551 = vmatprep.subr.bf16.mxu0 %v691
    %1552 = vmatpush1.bf16.msra.mxu0 %v690
    %1553 = vmatprep.subr.bf16.mxu0 %v693
    %1554 = vmatpush1.bf16.msra.mxu0 %v692
    %1555 = vmatprep.subr.bf16.mxu0 %v695
    %1556 = vmatpush1.bf16.msra.mxu0 %v694
    %1557 = vmatprep.subr.bf16.mxu0 %v697
    %1558 = vmatpush1.bf16.msra.mxu0 %v696
    %1559 = vmatprep.subr.bf16.mxu0 %v699
    %1560 = vmatpush1.bf16.msra.mxu0 %v698
    %1561 = vmatprep.subr.bf16.mxu0 %v701
    %1562 = vmatpush1.bf16.msra.mxu0 %v700
    %1563 = vmatprep.subr.bf16.mxu0 %v703
    %1564 = vmatpush1.bf16.msra.mxu0 %v702
    %1565 = vmatprep.subr.bf16.mxu0 %v705
    %1566 = vmatpush1.bf16.msra.mxu0 %v704
    %1567 = vmatprep.subr.bf16.mxu0 %v707
    %1568 = vmatpush1.bf16.msra.mxu0 %v706
    %1569 = vmatprep.subr.bf16.mxu0 %v709
    %1570 = vmatpush1.bf16.msra.mxu0 %v708
    %1571 = vmatprep.subr.bf16.mxu0 %v711
    %1572 = vmatpush1.bf16.msra.mxu0 %v710
    %1573 = vmatprep.subr.bf16.mxu0 %v713
    %1574 = vmatpush1.bf16.msra.mxu0 %v712
    %1575 = vmatprep.subr.bf16.mxu0 %v715
    %1576 = vmatpush1.bf16.msra.mxu0 %v714
    %1577 = vmatprep.subr.bf16.mxu0 %v717
    %1578 = vmatpush1.bf16.msra.mxu0 %v716
    %1579 = vmatprep.subr.bf16.mxu0 %v719
    %1580 = vmatpush1.bf16.msra.mxu0 %v718
    %1581 = vmatprep.subr.bf16.mxu0 %v721
    %1582 = vmatpush1.bf16.msra.mxu0 %v720
    %1583 = vmatprep.mubr.bf16.mxu0 %v1546
    %1584 = vmatmul.mubr.bf16.gmra.mrb[0].mxu0 %v1545
    %v1585 = vpop.f32.mrb[0].mxu0
    %v1586 = vadd.f32 %v395, %v1585
    %v1587 = vpop.f32.mrb[0].mxu0
    %v1588 = vadd.f32 %v399, %v1587
    %v1589 = vpop.f32.mrb[0].mxu0
    %v1590 = vadd.f32 %v395, %v1589
    %v1591 = vpop.f32.mrb[0].mxu0
    %v1592 = vadd.f32 %v399, %v1591
    %1593 = vdwg.mxu0
    %1594 = vmatprep.subr.bf16.mxu0 %v723
    %1595 = vmatpush1.bf16.msra.mxu0 %v722
    %1596 = vmatprep.subr.bf16.mxu0 %v725
    %1597 = vmatpush1.bf16.msra.mxu0 %v724
    %1598 = vmatprep.subr.bf16.mxu0 %v727
    %1599 = vmatpush1.bf16.msra.mxu0 %v726
    %1600 = vmatprep.subr.bf16.mxu0 %v729
    %1601 = vmatpush1.bf16.msra.mxu0 %v728
    %1602 = vmatprep.subr.bf16.mxu0 %v731
    %1603 = vmatpush1.bf16.msra.mxu0 %v730
    %1604 = vmatprep.subr.bf16.mxu0 %v733
    %1605 = vmatpush1.bf16.msra.mxu0 %v732
    %1606 = vmatprep.subr.bf16.mxu0 %v735
    %1607 = vmatpush1.bf16.msra.mxu0 %v734
    %1608 = vmatprep.subr.bf16.mxu0 %v737
    %1609 = vmatpush1.bf16.msra.mxu0 %v736
    %1610 = vmatprep.subr.bf16.mxu0 %v739
    %1611 = vmatpush1.bf16.msra.mxu0 %v738
    %1612 = vmatprep.subr.bf16.mxu0 %v741
    %1613 = vmatpush1.bf16.msra.mxu0 %v740
    %1614 = vmatprep.subr.bf16.mxu0 %v743
    %1615 = vmatpush1.bf16.msra.mxu0 %v742
    %1616 = vmatprep.subr.bf16.mxu0 %v745
    %1617 = vmatpush1.bf16.msra.mxu0 %v744
    %1618 = vmatprep.subr.bf16.mxu0 %v747
    %1619 = vmatpush1.bf16.msra.mxu0 %v746
    %1620 = vmatprep.subr.bf16.mxu0 %v749
    %1621 = vmatpush1.bf16.msra.mxu0 %v748
    %1622 = vmatprep.subr.bf16.mxu0 %v751
    %1623 = vmatpush1.bf16.msra.mxu0 %v750
    %1624 = vmatprep.subr.bf16.mxu0 %v753
    %1625 = vmatpush1.bf16.msra.mxu0 %v752
    %1626 = vmatprep.mubr.bf16.mxu0 %v1548
    %1627 = vmatmul.mubr.bf16.gmra.mrb[0].mxu0 %v1547
    %v1628 = vpop.f32.mrb[0].mxu0
    %v1629 = vadd.f32 %v1586, %v1628
    %v1630 = vpop.f32.mrb[0].mxu0
    %v1631 = vadd.f32 %v1588, %v1630
    %v1632 = vpop.f32.mrb[0].mxu0
    %v1633 = vadd.f32 %v1590, %v1632
    %v1634 = vpop.f32.mrb[0].mxu0
    %v1635 = vadd.f32 %v1592, %v1634
    %1636 = vdwg.mxu0
    %1637 = vmatprep.subr.bf16.mxu0 %v755
    %1638 = vmatpush1.bf16.msra.mxu0 %v754
    %1639 = vmatprep.subr.bf16.mxu0 %v757
    %1640 = vmatpush1.bf16.msra.mxu0 %v756
    %1641 = vmatprep.subr.bf16.mxu0 %v759
    %1642 = vmatpush1.bf16.msra.mxu0 %v758
    %1643 = vmatprep.subr.bf16.mxu0 %v761
    %1644 = vmatpush1.bf16.msra.mxu0 %v760
    %1645 = vmatprep.subr.bf16.mxu0 %v763
    %1646 = vmatpush1.bf16.msra.mxu0 %v762
    %1647 = vmatprep.subr.bf16.mxu0 %v765
    %1648 = vmatpush1.bf16.msra.mxu0 %v764
    %1649 = vmatprep.subr.bf16.mxu0 %v767
    %1650 = vmatpush1.bf16.msra.mxu0 %v766
    %1651 = vmatprep.subr.bf16.mxu0 %v769
    %1652 = vmatpush1.bf16.msra.mxu0 %v768
    %1653 = vmatprep.subr.bf16.mxu0 %v771
    %1654 = vmatpush1.bf16.msra.mxu0 %v770
    %1655 = vmatprep.subr.bf16.mxu0 %v773
    %1656 = vmatpush1.bf16.msra.mxu0 %v772
    %1657 = vmatprep.subr.bf16.mxu0 %v775
    %1658 = vmatpush1.bf16.msra.mxu0 %v774
    %1659 = vmatprep.subr.bf16.mxu0 %v777
    %1660 = vmatpush1.bf16.msra.mxu0 %v776
    %1661 = vmatprep.subr.bf16.mxu0 %v779
    %1662 = vmatpush1.bf16.msra.mxu0 %v778
    %1663 = vmatprep.subr.bf16.mxu0 %v781
    %1664 = vmatpush1.bf16.msra.mxu0 %v780
    %1665 = vmatprep.subr.bf16.mxu0 %v783
    %1666 = vmatpush1.bf16.msra.mxu0 %v782
    %1667 = vmatprep.subr.bf16.mxu0 %v785
    %1668 = vmatpush1.bf16.msra.mxu0 %v784
    %1669 = vmatprep.mubr.bf16.mxu0 %v1550
    %1670 = vmatmul.mubr.bf16.gmra.mrb[0].mxu0 %v1549
    %v1671 = vpop.f32.mrb[0].mxu0
    %v1672 = vadd.f32 %v1629, %v1671
    %v1673 = vpop.f32.mrb[0].mxu0
    %v1674 = vadd.f32 %v1631, %v1673
    %v1675 = vpop.f32.mrb[0].mxu0
    %v1676 = vadd.f32 %v1633, %v1675
    %v1677 = vpop.f32.mrb[0].mxu0
    %v1678 = vadd.f32 %v1635, %v1677
    %1679 = vdwg.mxu0
    %v1682 = vrot.slane %v1676, 2
    %v1683 = vrot.slane %v1678, 2
    %v1686 = vsel %vm356, %v1672, %v1682
    %v1687 = vsel %vm356, %v1674, %v1683
    %v1688 = vmax.f32 %v1686, 0.0
    %v1689 = vmax.f32 %v1687, 0.0
    %v1690 = vmax.f32 %v1682, 0.0
    %v1691 = vmax.f32 %v1683, 0.0
    %v1694 = vrot.slane %v1688, 7
    %v1695 = vrot.slane %v1689, 7
    %v1700 = vrot.slane %v1688, 5
    %v1701 = vrot.slane %v1690, 5
    %v1702 = vsel %vm302, %v1700, %v1701
    %v1703 = vrot.slane %v1689, 5
    %v1704 = vrot.slane %v1691, 5
    %v1705 = vsel %vm302, %v1703, %v1704
    %v1708 = vsel %vm287, 0.0, %v1694
    %v1709 = vsel %vm287, 0.0, %v1695
    %v1710 = vsel %vm319, %v1708, 0.0
    %v1711 = vsel %vm319, %v1709, 0.0
    %v1712 = vsel %vm287, 0.0, %v1702
    %v1713 = vsel %vm287, 0.0, %v1705
    %v1714 = vsel %vm319, %v1712, 0.0
    %v1715 = vsel %vm319, %v1713, 0.0
    %v1720 = vrot.slane %v1710, 1
    %v1721 = vrot.slane %v1714, 1
    %v1722 = vsel %vm319, %v1720, %v1721
    %v1723 = vrot.slane %v1711, 1
    %v1724 = vrot.slane %v1715, 1
    %v1725 = vsel %vm319, %v1723, %v1724
    %v1730 = vrot.slane %v1710, 2
    %v1731 = vrot.slane %v1714, 2
    %v1732 = vsel %vm356, %v1730, %v1731
    %v1733 = vrot.slane %v1711, 2
    %v1734 = vrot.slane %v1715, 2
    %v1735 = vsel %vm356, %v1733, %v1734
    %v1740 = vpack.c.bf16 %v1714, %v1710
    %v1741 = vpack.c.bf16 %v1715, %v1711
    %v1742 = vpack.c.bf16 %v1721, %v1722
    %v1743 = vpack.c.bf16 %v1724, %v1725
    %v1744 = vpack.c.bf16 %v1731, %v1732
    %v1745 = vpack.c.bf16 %v1734, %v1735
    %1746 = vmatprep.subr.bf16.mxu0 %v691
    %1747 = vmatpush1.bf16.msra.mxu0 %v690
    %1748 = vmatprep.subr.bf16.mxu0 %v693
    %1749 = vmatpush1.bf16.msra.mxu0 %v692
    %1750 = vmatprep.subr.bf16.mxu0 %v695
    %1751 = vmatpush1.bf16.msra.mxu0 %v694
    %1752 = vmatprep.subr.bf16.mxu0 %v697
    %1753 = vmatpush1.bf16.msra.mxu0 %v696
    %1754 = vmatprep.subr.bf16.mxu0 %v699
    %1755 = vmatpush1.bf16.msra.mxu0 %v698
    %1756 = vmatprep.subr.bf16.mxu0 %v701
    %1757 = vmatpush1.bf16.msra.mxu0 %v700
    %1758 = vmatprep.subr.bf16.mxu0 %v703
    %1759 = vmatpush1.bf16.msra.mxu0 %v702
    %1760 = vmatprep.subr.bf16.mxu0 %v705
    %1761 = vmatpush1.bf16.msra.mxu0 %v704
    %1762 = vmatprep.subr.bf16.mxu0 %v707
    %1763 = vmatpush1.bf16.msra.mxu0 %v706
    %1764 = vmatprep.subr.bf16.mxu0 %v709
    %1765 = vmatpush1.bf16.msra.mxu0 %v708
    %1766 = vmatprep.subr.bf16.mxu0 %v711
    %1767 = vmatpush1.bf16.msra.mxu0 %v710
    %1768 = vmatprep.subr.bf16.mxu0 %v713
    %1769 = vmatpush1.bf16.msra.mxu0 %v712
    %1770 = vmatprep.subr.bf16.mxu0 %v715
    %1771 = vmatpush1.bf16.msra.mxu0 %v714
    %1772 = vmatprep.subr.bf16.mxu0 %v717
    %1773 = vmatpush1.bf16.msra.mxu0 %v716
    %1774 = vmatprep.subr.bf16.mxu0 %v719
    %1775 = vmatpush1.bf16.msra.mxu0 %v718
    %1776 = vmatprep.subr.bf16.mxu0 %v721
    %1777 = vmatpush1.bf16.msra.mxu0 %v720
    %1778 = vmatprep.mubr.bf16.mxu0 %v1741
    %1779 = vmatmul.mubr.bf16.gmra.mrb[0].mxu0 %v1740
    %v1780 = vpop.f32.mrb[0].mxu0
    %v1781 = vadd.f32 %v395, %v1780
    %v1782 = vpop.f32.mrb[0].mxu0
    %v1783 = vadd.f32 %v399, %v1782
    %v1784 = vpop.f32.mrb[0].mxu0
    %v1785 = vadd.f32 %v395, %v1784
    %v1786 = vpop.f32.mrb[0].mxu0
    %v1787 = vadd.f32 %v399, %v1786
    %1788 = vdwg.mxu0
    %1789 = vmatprep.subr.bf16.mxu0 %v723
    %1790 = vmatpush1.bf16.msra.mxu0 %v722
    %1791 = vmatprep.subr.bf16.mxu0 %v725
    %1792 = vmatpush1.bf16.msra.mxu0 %v724
    %1793 = vmatprep.subr.bf16.mxu0 %v727
    %1794 = vmatpush1.bf16.msra.mxu0 %v726
    %1795 = vmatprep.subr.bf16.mxu0 %v729
    %1796 = vmatpush1.bf16.msra.mxu0 %v728
    %1797 = vmatprep.subr.bf16.mxu0 %v731
    %1798 = vmatpush1.bf16.msra.mxu0 %v730
    %1799 = vmatprep.subr.bf16.mxu0 %v733
    %1800 = vmatpush1.bf16.msra.mxu0 %v732
    %1801 = vmatprep.subr.bf16.mxu0 %v735
    %1802 = vmatpush1.bf16.msra.mxu0 %v734
    %1803 = vmatprep.subr.bf16.mxu0 %v737
    %1804 = vmatpush1.bf16.msra.mxu0 %v736
    %1805 = vmatprep.subr.bf16.mxu0 %v739
    %1806 = vmatpush1.bf16.msra.mxu0 %v738
    %1807 = vmatprep.subr.bf16.mxu0 %v741
    %1808 = vmatpush1.bf16.msra.mxu0 %v740
    %1809 = vmatprep.subr.bf16.mxu0 %v743
    %1810 = vmatpush1.bf16.msra.mxu0 %v742
    %1811 = vmatprep.subr.bf16.mxu0 %v745
    %1812 = vmatpush1.bf16.msra.mxu0 %v744
    %1813 = vmatprep.subr.bf16.mxu0 %v747
    %1814 = vmatpush1.bf16.msra.mxu0 %v746
    %1815 = vmatprep.subr.bf16.mxu0 %v749
    %1816 = vmatpush1.bf16.msra.mxu0 %v748
    %1817 = vmatprep.subr.bf16.mxu0 %v751
    %1818 = vmatpush1.bf16.msra.mxu0 %v750
    %1819 = vmatprep.subr.bf16.mxu0 %v753
    %1820 = vmatpush1.bf16.msra.mxu0 %v752
    %1821 = vmatprep.mubr.bf16.mxu0 %v1743
    %1822 = vmatmul.mubr.bf16.gmra.mrb[0].mxu0 %v1742
    %v1823 = vpop.f32.mrb[0].mxu0
    %v1824 = vadd.f32 %v1781, %v1823
    %v1825 = vpop.f32.mrb[0].mxu0
    %v1826 = vadd.f32 %v1783, %v1825
    %v1827 = vpop.f32.mrb[0].mxu0
    %v1828 = vadd.f32 %v1785, %v1827
    %v1829 = vpop.f32.mrb[0].mxu0
    %v1830 = vadd.f32 %v1787, %v1829
    %1831 = vdwg.mxu0
    %1832 = vmatprep.subr.bf16.mxu0 %v755
    %1833 = vmatpush1.bf16.msra.mxu0 %v754
    %1834 = vmatprep.subr.bf16.mxu0 %v757
    %1835 = vmatpush1.bf16.msra.mxu0 %v756
    %1836 = vmatprep.subr.bf16.mxu0 %v759
    %1837 = vmatpush1.bf16.msra.mxu0 %v758
    %1838 = vmatprep.subr.bf16.mxu0 %v761
    %1839 = vmatpush1.bf16.msra.mxu0 %v760
    %1840 = vmatprep.subr.bf16.mxu0 %v763
    %1841 = vmatpush1.bf16.msra.mxu0 %v762
    %1842 = vmatprep.subr.bf16.mxu0 %v765
    %1843 = vmatpush1.bf16.msra.mxu0 %v764
    %1844 = vmatprep.subr.bf16.mxu0 %v767
    %1845 = vmatpush1.bf16.msra.mxu0 %v766
    %1846 = vmatprep.subr.bf16.mxu0 %v769
    %1847 = vmatpush1.bf16.msra.mxu0 %v768
    %1848 = vmatprep.subr.bf16.mxu0 %v771
    %1849 = vmatpush1.bf16.msra.mxu0 %v770
    %1850 = vmatprep.subr.bf16.mxu0 %v773
    %1851 = vmatpush1.bf16.msra.mxu0 %v772
    %1852 = vmatprep.subr.bf16.mxu0 %v775
    %1853 = vmatpush1.bf16.msra.mxu0 %v774
    %1854 = vmatprep.subr.bf16.mxu0 %v777
    %1855 = vmatpush1.bf16.msra.mxu0 %v776
    %1856 = vmatprep.subr.bf16.mxu0 %v779
    %1857 = vmatpush1.bf16.msra.mxu0 %v778
    %1858 = vmatprep.subr.bf16.mxu0 %v781
    %1859 = vmatpush1.bf16.msra.mxu0 %v780
    %1860 = vmatprep.subr.bf16.mxu0 %v783
    %1861 = vmatpush1.bf16.msra.mxu0 %v782
    %1862 = vmatprep.subr.bf16.mxu0 %v785
    %1863 = vmatpush1.bf16.msra.mxu0 %v784
    %1864 = vmatprep.mubr.bf16.mxu0 %v1745
    %1865 = vmatmul.mubr.bf16.gmra.mrb[0].mxu0 %v1744
    %v1866 = vpop.f32.mrb[0].mxu0
    %v1867 = vadd.f32 %v1824, %v1866
    %v1868 = vpop.f32.mrb[0].mxu0
    %v1869 = vadd.f32 %v1826, %v1868
    %v1870 = vpop.f32.mrb[0].mxu0
    %v1871 = vadd.f32 %v1828, %v1870
    %v1872 = vpop.f32.mrb[0].mxu0
    %v1873 = vadd.f32 %v1830, %v1872
    %1874 = vdwg.mxu0
    %v1877 = vrot.slane %v1871, 2
    %v1878 = vrot.slane %v1873, 2
    %v1881 = vsel %vm356, %v1867, %v1877
    %v1882 = vsel %vm356, %v1869, %v1878
    %v1883 = vadd.f32 %v1881, %v1485
    %v1884 = vadd.f32 %v1882, %v1486
    %v1885 = vadd.f32 %v1877, %v1491
    %v1886 = vadd.f32 %v1878, %v1492
    %v1889 = vrot.slane %v1883, 1
    %v1890 = vrot.slane %v1884, 1
    %v1893 = vmax.f32 %v1883, %v1889
    %v1894 = vmax.f32 %v1884, %v1890
    %v1895 = vrot.slane %v1883, 2
    %v1896 = vrot.slane %v1884, 2
    %v1899 = vmax.f32 %v1893, %v1895
    %v1900 = vmax.f32 %v1894, %v1896
    %v1903 = vrot.slane %v1885, 2
    %v1904 = vrot.slane %v1886, 2
    %v1907 = vmax.f32 %v1893, %v1903
    %v1908 = vmax.f32 %v1894, %v1904
    %v1909 = vrot.slane %v1885, 1
    %v1910 = vrot.slane %v1886, 1
    %v1913 = vmax.f32 %v1885, %v1909
    %v1914 = vmax.f32 %v1886, %v1910
    %v1915 = vmax.f32 %v1913, %v1903
    %v1916 = vmax.f32 %v1914, %v1904
    %v1919 = vrot.slane %v1899, 1
    %v1920 = vrot.slane %v1900, 1
    %v1925 = vrot.slane %v1907, 4
    %v1926 = vrot.slane %v1908, 4
    %v1931 = vrot.slane %v1915, 5
    %v1932 = vrot.slane %v1916, 5
    %v1935 = vsel %vm287, %v1899, %v1919
    %v1936 = vsel %vm287, %v1900, %v1920
    %v1937 = vsel %vm1472, %v1935, %v1925
    %v1938 = vsel %vm1472, %v1936, %v1926
    %v1939 = vsel %vm302, %v1937, %v1931
    %v1940 = vsel %vm302, %v1938, %v1932
    %v1941 = vmax.f32 %v1939, 0.0
    %v1942 = vmax.f32 %v1940, 0.0
    %v1945 = vrot.slane %v1941, 7
    %v1946 = vrot.slane %v1942, 7
    %v1949 = vrot.slane %v1941, 5
    %v1950 = vrot.slane %v1942, 5
    %v1953 = vsel %vm287, 0.0, %v1945
    %v1954 = vsel %vm287, 0.0, %v1946
    %v1955 = vsel %vm302, %v1953, 0.0
    %v1956 = vsel %vm302, %v1954, 0.0
    %v1957 = vsel %vm1477, %v1955, 0.0
    %v1958 = vsel %vm1477, %v1956, 0.0
    %v1959 = vsel %vm1480, %v1957, %v1949
    %v1960 = vsel %vm1480, %v1958, %v1950
    %v1961 = vsel %vm319, %v1959, 0.0
    %v1962 = vsel %vm319, %v1960, 0.0
    %v1965 = vrot.slane %v1961, 1
    %v1966 = vrot.slane %v1962, 1
    %v1969 = vrot.slane %v1961, 2
    %v1970 = vrot.slane %v1962, 2
    %v1973 = vpack.c.bf16 %v1961, %v1961
    %v1974 = vpack.c.bf16 %v1962, %v1962
    %v1975 = vpack.c.bf16 %v1965, %v1965
    %v1976 = vpack.c.bf16 %v1966, %v1966
    %v1977 = vpack.c.bf16 %v1969, %v1969
    %v1978 = vpack.c.bf16 %v1970, %v1970
    %1979 = vmatprep.subr.bf16.mxu0 %v691
    %1980 = vmatpush1.bf16.msra.mxu0 %v690
    %1981 = vmatprep.subr.bf16.mxu0 %v693
    %1982 = vmatpush1.bf16.msra.mxu0 %v692
    %1983 = vmatprep.subr.bf16.mxu0 %v695
    %1984 = vmatpush1.bf16.msra.mxu0 %v694
    %1985 = vmatprep.subr.bf16.mxu0 %v697
    %1986 = vmatpush1.bf16.msra.mxu0 %v696
    %1987 = vmatprep.subr.bf16.mxu0 %v699
    %1988 = vmatpush1.bf16.msra.mxu0 %v698
    %1989 = vmatprep.subr.bf16.mxu0 %v701
    %1990 = vmatpush1.bf16.msra.mxu0 %v700
    %1991 = vmatprep.subr.bf16.mxu0 %v703
    %1992 = vmatpush1.bf16.msra.mxu0 %v702
    %1993 = vmatprep.subr.bf16.mxu0 %v705
    %1994 = vmatpush1.bf16.msra.mxu0 %v704
    %1995 = vmatprep.subr.bf16.mxu0 %v707
    %1996 = vmatpush1.bf16.msra.mxu0 %v706
    %1997 = vmatprep.subr.bf16.mxu0 %v709
    %1998 = vmatpush1.bf16.msra.mxu0 %v708
    %1999 = vmatprep.subr.bf16.mxu0 %v711
    %2000 = vmatpush1.bf16.msra.mxu0 %v710
    %2001 = vmatprep.subr.bf16.mxu0 %v713
    %2002 = vmatpush1.bf16.msra.mxu0 %v712
    %2003 = vmatprep.subr.bf16.mxu0 %v715
    %2004 = vmatpush1.bf16.msra.mxu0 %v714
    %2005 = vmatprep.subr.bf16.mxu0 %v717
    %2006 = vmatpush1.bf16.msra.mxu0 %v716
    %2007 = vmatprep.subr.bf16.mxu0 %v719
    %2008 = vmatpush1.bf16.msra.mxu0 %v718
    %2009 = vmatprep.subr.bf16.mxu0 %v721
    %2010 = vmatpush1.bf16.msra.mxu0 %v720
    %2011 = vmatprep.mubr.bf16.mxu0 %v1974
    %2012 = vmatmul.mubr.bf16.gmra.mrb[0].mxu0 %v1973
    %v2013 = vpop.f32.mrb[0].mxu0
    %v2014 = vadd.f32 %v395, %v2013
    %v2015 = vpop.f32.mrb[0].mxu0
    %v2016 = vadd.f32 %v399, %v2015
    %v2017 = vpop.f32.mrb[0].mxu0
    %v2018 = vpop.f32.mrb[0].mxu0
    %2019 = vdwg.mxu0
    %2020 = vmatprep.subr.bf16.mxu0 %v723
    %2021 = vmatpush1.bf16.msra.mxu0 %v722
    %2022 = vmatprep.subr.bf16.mxu0 %v725
    %2023 = vmatpush1.bf16.msra.mxu0 %v724
    %2024 = vmatprep.subr.bf16.mxu0 %v727
    %2025 = vmatpush1.bf16.msra.mxu0 %v726
    %2026 = vmatprep.subr.bf16.mxu0 %v729
    %2027 = vmatpush1.bf16.msra.mxu0 %v728
    %2028 = vmatprep.subr.bf16.mxu0 %v731
    %2029 = vmatpush1.bf16.msra.mxu0 %v730
    %2030 = vmatprep.subr.bf16.mxu0 %v733
    %2031 = vmatpush1.bf16.msra.mxu0 %v732
    %2032 = vmatprep.subr.bf16.mxu0 %v735
    %2033 = vmatpush1.bf16.msra.mxu0 %v734
    %2034 = vmatprep.subr.bf16.mxu0 %v737
    %2035 = vmatpush1.bf16.msra.mxu0 %v736
    %2036 = vmatprep.subr.bf16.mxu0 %v739
    %2037 = vmatpush1.bf16.msra.mxu0 %v738
    %2038 = vmatprep.subr.bf16.mxu0 %v741
    %2039 = vmatpush1.bf16.msra.mxu0 %v740
    %2040 = vmatprep.subr.bf16.mxu0 %v743
    %2041 = vmatpush1.bf16.msra.mxu0 %v742
    %2042 = vmatprep.subr.bf16.mxu0 %v745
    %2043 = vmatpush1.bf16.msra.mxu0 %v744
    %2044 = vmatprep.subr.bf16.mxu0 %v747
    %2045 = vmatpush1.bf16.msra.mxu0 %v746
    %2046 = vmatprep.subr.bf16.mxu0 %v749
    %2047 = vmatpush1.bf16.msra.mxu0 %v748
    %2048 = vmatprep.subr.bf16.mxu0 %v751
    %2049 = vmatpush1.bf16.msra.mxu0 %v750
    %2050 = vmatprep.subr.bf16.mxu0 %v753
    %2051 = vmatpush1.bf16.msra.mxu0 %v752
    %2052 = vmatprep.mubr.bf16.mxu0 %v1976
    %2053 = vmatmul.mubr.bf16.gmra.mrb[0].mxu0 %v1975
    %v2054 = vpop.f32.mrb[0].mxu0
    %v2055 = vadd.f32 %v2014, %v2054
    %v2056 = vpop.f32.mrb[0].mxu0
    %v2057 = vadd.f32 %v2016, %v2056
    %v2058 = vpop.f32.mrb[0].mxu0
    %v2059 = vpop.f32.mrb[0].mxu0
    %2060 = vdwg.mxu0
    %2061 = vmatprep.subr.bf16.mxu0 %v755
    %2062 = vmatpush1.bf16.msra.mxu0 %v754
    %2063 = vmatprep.subr.bf16.mxu0 %v757
    %2064 = vmatpush1.bf16.msra.mxu0 %v756
    %2065 = vmatprep.subr.bf16.mxu0 %v759
    %2066 = vmatpush1.bf16.msra.mxu0 %v758
    %2067 = vmatprep.subr.bf16.mxu0 %v761
    %2068 = vmatpush1.bf16.msra.mxu0 %v760
    %2069 = vmatprep.subr.bf16.mxu0 %v763
    %2070 = vmatpush1.bf16.msra.mxu0 %v762
    %2071 = vmatprep.subr.bf16.mxu0 %v765
    %2072 = vmatpush1.bf16.msra.mxu0 %v764
    %2073 = vmatprep.subr.bf16.mxu0 %v767
    %2074 = vmatpush1.bf16.msra.mxu0 %v766
    %2075 = vmatprep.subr.bf16.mxu0 %v769
    %2076 = vmatpush1.bf16.msra.mxu0 %v768
    %2077 = vmatprep.subr.bf16.mxu0 %v771
    %2078 = vmatpush1.bf16.msra.mxu0 %v770
    %2079 = vmatprep.subr.bf16.mxu0 %v773
    %2080 = vmatpush1.bf16.msra.mxu0 %v772
    %2081 = vmatprep.subr.bf16.mxu0 %v775
    %2082 = vmatpush1.bf16.msra.mxu0 %v774
    %2083 = vmatprep.subr.bf16.mxu0 %v777
    %2084 = vmatpush1.bf16.msra.mxu0 %v776
    %2085 = vmatprep.subr.bf16.mxu0 %v779
    %2086 = vmatpush1.bf16.msra.mxu0 %v778
    %2087 = vmatprep.subr.bf16.mxu0 %v781
    %2088 = vmatpush1.bf16.msra.mxu0 %v780
    %2089 = vmatprep.subr.bf16.mxu0 %v783
    %2090 = vmatpush1.bf16.msra.mxu0 %v782
    %2091 = vmatprep.subr.bf16.mxu0 %v785
    %2092 = vmatpush1.bf16.msra.mxu0 %v784
    %2093 = vmatprep.mubr.bf16.mxu0 %v1978
    %2094 = vmatmul.mubr.bf16.gmra.mrb[0].mxu0 %v1977
    %v2095 = vpop.f32.mrb[0].mxu0
    %v2096 = vadd.f32 %v2055, %v2095
    %v2097 = vpop.f32.mrb[0].mxu0
    %v2098 = vadd.f32 %v2057, %v2097
    %v2099 = vpop.f32.mrb[0].mxu0
    %v2100 = vpop.f32.mrb[0].mxu0
    %2101 = vdwg.mxu0
    %v2104 = vrot.slane %v2096, 2
    %v2105 = vrot.slane %v2098, 2
    %v2108 = vsel %vm1472, %v2096, %v2104
    %v2109 = vsel %vm1472, %v2098, %v2105
    %v2110 = vmax.f32 %v2108, 0.0
    %v2111 = vmax.f32 %v2109, 0.0
    %v2114 = vrot.slane %v2110, 7
    %v2115 = vrot.slane %v2111, 7
    %v2118 = vrot.slane %v2110, 5
    %v2119 = vrot.slane %v2111, 5
    %v2122 = vsel %vm287, 0.0, %v2114
    %v2123 = vsel %vm287, 0.0, %v2115
    %v2124 = vsel %vm302, %v2122, 0.0
    %v2125 = vsel %vm302, %v2123, 0.0
    %v2126 = vsel %vm1477, %v2124, 0.0
    %v2127 = vsel %vm1477, %v2125, 0.0
    %v2128 = vsel %vm1480, %v2126, %v2118
    %v2129 = vsel %vm1480, %v2127, %v2119
    %v2130 = vsel %vm319, %v2128, 0.0
    %v2131 = vsel %vm319, %v2129, 0.0
    %v2134 = vrot.slane %v2130, 1
    %v2135 = vrot.slane %v2131, 1
    %v2138 = vrot.slane %v2130, 2
    %v2139 = vrot.slane %v2131, 2
    %v2142 = vpack.c.bf16 %v2130, %v2130
    %v2143 = vpack.c.bf16 %v2131, %v2131
    %v2144 = vpack.c.bf16 %v2134, %v2134
    %v2145 = vpack.c.bf16 %v2135, %v2135
    %v2146 = vpack.c.bf16 %v2138, %v2138
    %v2147 = vpack.c.bf16 %v2139, %v2139
    %2148 = vmatprep.subr.bf16.mxu0 %v691
    %2149 = vmatpush1.bf16.msra.mxu0 %v690
    %2150 = vmatprep.subr.bf16.mxu0 %v693
    %2151 = vmatpush1.bf16.msra.mxu0 %v692
    %2152 = vmatprep.subr.bf16.mxu0 %v695
    %2153 = vmatpush1.bf16.msra.mxu0 %v694
    %2154 = vmatprep.subr.bf16.mxu0 %v697
    %2155 = vmatpush1.bf16.msra.mxu0 %v696
    %2156 = vmatprep.subr.bf16.mxu0 %v699
    %2157 = vmatpush1.bf16.msra.mxu0 %v698
    %2158 = vmatprep.subr.bf16.mxu0 %v701
    %2159 = vmatpush1.bf16.msra.mxu0 %v700
    %2160 = vmatprep.subr.bf16.mxu0 %v703
    %2161 = vmatpush1.bf16.msra.mxu0 %v702
    %2162 = vmatprep.subr.bf16.mxu0 %v705
    %2163 = vmatpush1.bf16.msra.mxu0 %v704
    %2164 = vmatprep.subr.bf16.mxu0 %v707
    %2165 = vmatpush1.bf16.msra.mxu0 %v706
    %2166 = vmatprep.subr.bf16.mxu0 %v709
    %2167 = vmatpush1.bf16.msra.mxu0 %v708
    %2168 = vmatprep.subr.bf16.mxu0 %v711
    %2169 = vmatpush1.bf16.msra.mxu0 %v710
    %2170 = vmatprep.subr.bf16.mxu0 %v713
    %2171 = vmatpush1.bf16.msra.mxu0 %v712
    %2172 = vmatprep.subr.bf16.mxu0 %v715
    %2173 = vmatpush1.bf16.msra.mxu0 %v714
    %2174 = vmatprep.subr.bf16.mxu0 %v717
    %2175 = vmatpush1.bf16.msra.mxu0 %v716
    %2176 = vmatprep.subr.bf16.mxu0 %v719
    %2177 = vmatpush1.bf16.msra.mxu0 %v718
    %2178 = vmatprep.subr.bf16.mxu0 %v721
    %2179 = vmatpush1.bf16.msra.mxu0 %v720
    %2180 = vmatprep.mubr.bf16.mxu0 %v2143
    %2181 = vmatmul.mubr.bf16.gmra.mrb[0].mxu0 %v2142
    %v2182 = vpop.f32.mrb[0].mxu0
    %v2183 = vadd.f32 %v395, %v2182
    %v2184 = vpop.f32.mrb[0].mxu0
    %v2185 = vadd.f32 %v399, %v2184
    %v2186 = vpop.f32.mrb[0].mxu0
    %v2187 = vpop.f32.mrb[0].mxu0
    %2188 = vdwg.mxu0
    %2189 = vmatprep.subr.bf16.mxu0 %v723
    %2190 = vmatpush1.bf16.msra.mxu0 %v722
    %2191 = vmatprep.subr.bf16.mxu0 %v725
    %2192 = vmatpush1.bf16.msra.mxu0 %v724
    %2193 = vmatprep.subr.bf16.mxu0 %v727
    %2194 = vmatpush1.bf16.msra.mxu0 %v726
    %2195 = vmatprep.subr.bf16.mxu0 %v729
    %2196 = vmatpush1.bf16.msra.mxu0 %v728
    %2197 = vmatprep.subr.bf16.mxu0 %v731
    %2198 = vmatpush1.bf16.msra.mxu0 %v730
    %2199 = vmatprep.subr.bf16.mxu0 %v733
    %2200 = vmatpush1.bf16.msra.mxu0 %v732
    %2201 = vmatprep.subr.bf16.mxu0 %v735
    %2202 = vmatpush1.bf16.msra.mxu0 %v734
    %2203 = vmatprep.subr.bf16.mxu0 %v737
    %2204 = vmatpush1.bf16.msra.mxu0 %v736
    %2205 = vmatprep.subr.bf16.mxu0 %v739
    %2206 = vmatpush1.bf16.msra.mxu0 %v738
    %2207 = vmatprep.subr.bf16.mxu0 %v741
    %2208 = vmatpush1.bf16.msra.mxu0 %v740
    %2209 = vmatprep.subr.bf16.mxu0 %v743
    %2210 = vmatpush1.bf16.msra.mxu0 %v742
    %2211 = vmatprep.subr.bf16.mxu0 %v745
    %2212 = vmatpush1.bf16.msra.mxu0 %v744
    %2213 = vmatprep.subr.bf16.mxu0 %v747
    %2214 = vmatpush1.bf16.msra.mxu0 %v746
    %2215 = vmatprep.subr.bf16.mxu0 %v749
    %2216 = vmatpush1.bf16.msra.mxu0 %v748
    %2217 = vmatprep.subr.bf16.mxu0 %v751
    %2218 = vmatpush1.bf16.msra.mxu0 %v750
    %2219 = vmatprep.subr.bf16.mxu0 %v753
    %2220 = vmatpush1.bf16.msra.mxu0 %v752
    %2221 = vmatprep.mubr.bf16.mxu0 %v2145
    %2222 = vmatmul.mubr.bf16.gmra.mrb[0].mxu0 %v2144
    %v2223 = vpop.f32.mrb[0].mxu0
    %v2224 = vadd.f32 %v2183, %v2223
    %v2225 = vpop.f32.mrb[0].mxu0
    %v2226 = vadd.f32 %v2185, %v2225
    %v2227 = vpop.f32.mrb[0].mxu0
    %v2228 = vpop.f32.mrb[0].mxu0
    %2229 = vdwg.mxu0
    %2230 = vmatprep.subr.bf16.mxu0 %v755
    %2231 = vmatpush1.bf16.msra.mxu0 %v754
    %2232 = vmatprep.subr.bf16.mxu0 %v757
    %2233 = vmatpush1.bf16.msra.mxu0 %v756
    %2234 = vmatprep.subr.bf16.mxu0 %v759
    %2235 = vmatpush1.bf16.msra.mxu0 %v758
    %2236 = vmatprep.subr.bf16.mxu0 %v761
    %2237 = vmatpush1.bf16.msra.mxu0 %v760
    %2238 = vmatprep.subr.bf16.mxu0 %v763
    %2239 = vmatpush1.bf16.msra.mxu0 %v762
    %2240 = vmatprep.subr.bf16.mxu0 %v765
    %2241 = vmatpush1.bf16.msra.mxu0 %v764
    %2242 = vmatprep.subr.bf16.mxu0 %v767
    %2243 = vmatpush1.bf16.msra.mxu0 %v766
    %2244 = vmatprep.subr.bf16.mxu0 %v769
    %2245 = vmatpush1.bf16.msra.mxu0 %v768
    %2246 = vmatprep.subr.bf16.mxu0 %v771
    %2247 = vmatpush1.bf16.msra.mxu0 %v770
    %2248 = vmatprep.subr.bf16.mxu0 %v773
    %2249 = vmatpush1.bf16.msra.mxu0 %v772
    %2250 = vmatprep.subr.bf16.mxu0 %v775
    %2251 = vmatpush1.bf16.msra.mxu0 %v774
    %2252 = vmatprep.subr.bf16.mxu0 %v777
    %2253 = vmatpush1.bf16.msra.mxu0 %v776
    %2254 = vmatprep.subr.bf16.mxu0 %v779
    %2255 = vmatpush1.bf16.msra.mxu0 %v778
    %2256 = vmatprep.subr.bf16.mxu0 %v781
    %2257 = vmatpush1.bf16.msra.mxu0 %v780
    %2258 = vmatprep.subr.bf16.mxu0 %v783
    %2259 = vmatpush1.bf16.msra.mxu0 %v782
    %2260 = vmatprep.subr.bf16.mxu0 %v785
    %2261 = vmatpush1.bf16.msra.mxu0 %v784
    %2262 = vmatprep.mubr.bf16.mxu0 %v2147
    %2263 = vmatmul.mubr.bf16.gmra.mrb[0].mxu0 %v2146
    %v2264 = vpop.f32.mrb[0].mxu0
    %v2265 = vadd.f32 %v2224, %v2264
    %v2266 = vpop.f32.mrb[0].mxu0
    %v2267 = vadd.f32 %v2226, %v2266
    %v2268 = vpop.f32.mrb[0].mxu0
    %v2269 = vpop.f32.mrb[0].mxu0
    %2270 = vdwg.mxu0
    %v2273 = vrot.slane %v2265, 2
    %v2274 = vrot.slane %v2267, 2
    %v2277 = vsel %vm1472, %v2265, %v2273
    %v2278 = vsel %vm1472, %v2267, %v2274
    %v2279 = vadd.f32 %v2277, %v1939
    %v2280 = vadd.f32 %v2278, %v1940
    %v2283 = vrot.slane %v2279, 1
    %v2284 = vrot.slane %v2280, 1
    %v2287 = vmax.f32 %v2279, %v2283
    %v2288 = vmax.f32 %v2280, %v2284
    %v2291 = vrot.slane %v2287, 1
    %v2292 = vrot.slane %v2288, 1
    %v2295 = vsel %vm287, %v2287, %v2291
    %v2296 = vsel %vm287, %v2288, %v2292
    %v2297 = vld [vmem:[%s5] sm:$0xff]
    %v2298 = vld [vmem:[%s5 + $0x8] sm:$0xff]
    %v2299 = vld [vmem:[%s5 + $0x10] sm:$0xff]
    %v2300 = vld [vmem:[%s5 + $0x18] sm:$0xff]
    %v2301 = vld [vmem:[%s5 + $0x20] sm:$0xff]
    %v2302 = vld [vmem:[%s5 + $0x28] sm:$0xff]
    %v2303 = vld [vmem:[%s5 + $0x30] sm:$0xff]
    %v2304 = vld [vmem:[%s5 + $0x38] sm:$0xff]
    %v2305 = vld [vmem:[%s5 + $0x40] sm:$0xff]
    %v2306 = vld [vmem:[%s5 + $0x48] sm:$0xff]
    %v2307 = vld [vmem:[%s5 + $0x50] sm:$0xff]
    %v2308 = vld [vmem:[%s5 + $0x58] sm:$0xff]
    %v2309 = vld [vmem:[%s5 + $0x60] sm:$0xff]
    %v2310 = vld [vmem:[%s5 + $0x68] sm:$0xff]
    %v2311 = vld [vmem:[%s5 + $0x70] sm:$0xff]
    %v2312 = vld [vmem:[%s5 + $0x78] sm:$0xff]
    %v2313 = vld [vmem:[%s5 + $0x80] sm:$0xff]
    %v2314 = vld [vmem:[%s5 + $0x88] sm:$0xff]
    %v2315 = vld [vmem:[%s5 + $0x90] sm:$0xff]
    %v2316 = vld [vmem:[%s5 + $0x98] sm:$0xff]
    %v2317 = vld [vmem:[%s5 + $0xa0] sm:$0xff]
    %v2318 = vld [vmem:[%s5 + $0xa8] sm:$0xff]
    %v2319 = vld [vmem:[%s5 + $0xb0] sm:$0xff]
    %v2320 = vld [vmem:[%s5 + $0xb8] sm:$0xff]
    %v2321 = vld [vmem:[%s5 + $0xc0] sm:$0xff]
    %v2322 = vld [vmem:[%s5 + $0xc8] sm:$0xff]
    %v2323 = vld [vmem:[%s5 + $0xd0] sm:$0xff]
    %v2324 = vld [vmem:[%s5 + $0xd8] sm:$0xff]
    %v2325 = vld [vmem:[%s5 + $0xe0] sm:$0xff]
    %v2326 = vld [vmem:[%s5 + $0xe8] sm:$0xff]
    %v2327 = vld [vmem:[%s5 + $0xf0] sm:$0xff]
    %v2328 = vld [vmem:[%s5 + $0xf8] sm:$0xff]
    %v2329 = vld [vmem:[%s6] sm:$0x1]
    %v2331 = vlaneseq
    %v2332 = vshrl.u32 %v2331, 7
    %v2333 = vsub.s32 0, %v2332
    %v2334 = vrot.slane %v2329, %v2333
    %2336 = vmatprep.subr.mxu0 0.0
    %2337 = vmatpush1.msra.mxu0 %v2297
    %2338 = vmatprep.subr.mxu0 0.0
    %2339 = vmatpush1.msra.mxu0 %v2298
    %2340 = vmatprep.subr.mxu0 0.0
    %2341 = vmatpush1.msra.mxu0 %v2299
    %2342 = vmatprep.subr.mxu0 0.0
    %2343 = vmatpush1.msra.mxu0 %v2300
    %2344 = vmatprep.subr.mxu0 0.0
    %2345 = vmatpush1.msra.mxu0 %v2301
    %2346 = vmatprep.subr.mxu0 0.0
    %2347 = vmatpush1.msra.mxu0 %v2302
    %2348 = vmatprep.subr.mxu0 0.0
    %2349 = vmatpush1.msra.mxu0 %v2303
    %2350 = vmatprep.subr.mxu0 0.0
    %2351 = vmatpush1.msra.mxu0 %v2304
    %2352 = vmatprep.subr.mxu0 0.0
    %2353 = vmatpush1.msra.mxu0 %v2305
    %2354 = vmatprep.subr.mxu0 0.0
    %2355 = vmatpush1.msra.mxu0 %v2306
    %2356 = vmatprep.subr.mxu0 0.0
    %2357 = vmatpush1.msra.mxu0 %v2307
    %2358 = vmatprep.subr.mxu0 0.0
    %2359 = vmatpush1.msra.mxu0 %v2308
    %2360 = vmatprep.subr.mxu0 0.0
    %2361 = vmatpush1.msra.mxu0 %v2309
    %2362 = vmatprep.subr.mxu0 0.0
    %2363 = vmatpush1.msra.mxu0 %v2310
    %2364 = vmatprep.subr.mxu0 0.0
    %2365 = vmatpush1.msra.mxu0 %v2311
    %2366 = vmatprep.subr.mxu0 0.0
    %2367 = vmatpush1.msra.mxu0 %v2312
    %2368 = vmatprep.subr.mxu0 0.0
    %2369 = vmatpush1.msra.mxu0 %v2313
    %2370 = vmatprep.subr.mxu0 0.0
    %2371 = vmatpush1.msra.mxu0 %v2314
    %2372 = vmatprep.subr.mxu0 0.0
    %2373 = vmatpush1.msra.mxu0 %v2315
    %2374 = vmatprep.subr.mxu0 0.0
    %2375 = vmatpush1.msra.mxu0 %v2316
    %2376 = vmatprep.subr.mxu0 0.0
    %2377 = vmatpush1.msra.mxu0 %v2317
    %2378 = vmatprep.subr.mxu0 0.0
    %2379 = vmatpush1.msra.mxu0 %v2318
    %2380 = vmatprep.subr.mxu0 0.0
    %2381 = vmatpush1.msra.mxu0 %v2319
    %2382 = vmatprep.subr.mxu0 0.0
    %2383 = vmatpush1.msra.mxu0 %v2320
    %2384 = vmatprep.subr.mxu0 0.0
    %2385 = vmatpush1.msra.mxu0 %v2321
    %2386 = vmatprep.subr.mxu0 0.0
    %2387 = vmatpush1.msra.mxu0 %v2322
    %2388 = vmatprep.subr.mxu0 0.0
    %2389 = vmatpush1.msra.mxu0 %v2323
    %2390 = vmatprep.subr.mxu0 0.0
    %2391 = vmatpush1.msra.mxu0 %v2324
    %2392 = vmatprep.subr.mxu0 0.0
    %2393 = vmatpush1.msra.mxu0 %v2325
    %2394 = vmatprep.subr.mxu0 0.0
    %2395 = vmatpush1.msra.mxu0 %v2326
    %2396 = vmatprep.subr.mxu0 0.0
    %2397 = vmatpush1.msra.mxu0 %v2327
    %2398 = vmatprep.subr.mxu0 0.0
    %2399 = vmatpush1.msra.mxu0 %v2328
    %2400 = vmatprep.mubr.f32.mxu0 %v2296
    %2401 = vmatmul.mubr.f32.gmra.mrb[0].mxu0 %v2295
    %v2402 = vpop.f32.mrb[0].mxu0
    %v2403 = vadd.f32 %v2334, %v2402
    %v2404 = vpop.f32.mrb[0].mxu0
    %2405 = vdwg.mxu0
    %vm2406 = vcmask 25600
    %2407 = vst.msk [vmem:[#allocation2] sm:$0x3] %vm2406, %v2403
    // Predicated region
    $region30: #{dpcnn_forward.1} parent=1 // pred_check
      _
    $region31: #{dpcnn_forward.1} parent=1 // pred_check_branch
      %2409 = sbr.rel (0) target = $region33
    $region32: #{dpcnn_forward.1} parent=1 // pred_region
      %s2411 = ssub.s32 32, 32
      %2412 = vsyncadd [#allocation3], %s2411
      %s2414 = sshll.u32 [#allocation2], 4
      %s2415 = int_to_ptr.vmem [resolvable:$true] %s2414
      %2417 = dma.vmem_to_hbm [thread:$0]  %s2415, 32, %s7, [#allocation3]
    $region33: #{dpcnn_forward.1} parent=1 // pred_fallthru
      _
    // Predicated region
    $region34: #{dpcnn_forward.1} parent=1 // pred_check
      _
    $region35: #{dpcnn_forward.1} parent=1 // pred_check_branch
      %2419 = sbr.rel (0) target = $region37
    $region36: #{dpcnn_forward.1} parent=1 // pred_region
      %2420 = dma.done [#allocation3], 32
    $region37: #{dpcnn_forward.1} parent=1 // pred_fallthru
      _
    %2421 = vsyncpa [#allocation3], 1

</llo_original>
